<compile_context>
chip_gen: v5e
topology: v5e:2x2
jax: 0.10.0
libtpu: 0.0.40
codegen_flags: <defaults>
</compile_context>

<pallas_src>
import functools

import numpy as np
import jax
import jax.numpy as jnp
from jax.experimental import pallas as pl
from jax.experimental.pallas import tpu as pltpu

NEG_SLOPE = 0.01  # nn.LeakyReLU default negative_slope
BN_EPS = 1e-5


def _leaky(v):
    return jnp.where(v >= 0.0, v, NEG_SLOPE * v)


# --------------------------------------------------------------------------
# The single fused Pallas kernel
# --------------------------------------------------------------------------
def _dsn_megakernel(x_ref, wcat_ref, bcat_ref, whc_ref, bhc_ref,
                    w2c_ref, b2_ref, a2_ref,
                    w3c_ref, b3_ref, a3_ref,
                    w4c_ref, b4_ref, a4_ref,
                    packed_ref, dec_ref):
    B = x_ref.shape[0]
    two_co = wcat_ref.shape[1] - 2            # 2 * expert out_channels
    co = two_co // 2
    n1 = w2c_ref.shape[0]                     # decoder conv1 out_channels (256)
    nh = whc_ref.shape[1] - n1                # num_classes + 2

    # ---- both experts + gate logits: ONE matmul over concatenated weights ----
    y = jnp.dot(x_ref[...], wcat_ref[...],
                preferred_element_type=jnp.float32) + bcat_ref[...]     # (B, 2co+2)
    experts = _leaky(y[:, :two_co])           # [shared | private]
    logits = y[:, two_co:two_co + 2]          # gate logits (GAP+Linear folded)

    m = jnp.max(logits, axis=1, keepdims=True)
    e = jnp.exp(logits - m)
    wts = e / jnp.sum(e, axis=1, keepdims=True)                         # (B, 2)

    shared = experts[:, :co]
    private = experts[:, co:two_co]
    fused = wts[:, 0:1] * shared + wts[:, 1:2] * private                # (B, co)

    # ---- classifier + domain heads fused with decoder conv1: ONE matmul ----
    hc = jnp.dot(jnp.concatenate([shared, fused], axis=0), whc_ref[...],
                 preferred_element_type=jnp.float32) + bhc_ref[...]     # (2B, nh+256)
    heads = hc[:B, :nh]                       # shared @ [classifier | domain_disc]
    h = _leaky(hc[B:, nh:])                   # fused @ conv1(BN1-folded), (B, 256)

    # ---- lane-dense packed output: [experts | gate wts | head logits | 0-pad] ----
    pieces = [experts, wts, heads]
    pad_w = packed_ref.shape[1] - (two_co + 2 + nh)
    if pad_w > 0:
        pieces.append(jnp.zeros((B, pad_w), jnp.float32))
    packed_ref[...] = jnp.concatenate(pieces, axis=1)

    # ---- decoder: each (nearest-upsample -> 3x3 conv) layer is 2 matmuls ----
    #   hw   = h @ Wcat   (channel matmul at the SMALL previous resolution)
    #   out  = Acat @ g   (g = the 9 tap slices of hw stacked along rows, t-major)
    def upconv(h2d, ac_ref, wc_ref, b_ref):
        cout = b_ref.shape[1]
        P = ac_ref.shape[1] // 9              # previous-grid positions per sample
        hw = jnp.dot(h2d, wc_ref[...],
                     preferred_element_type=jnp.float32)                # (B*P, 9*cout)
        a = ac_ref[...]
        bvec = b_ref[...]
        outs = []
        for bi in range(B):                   # trace-time unrolled (B is tiny)
            hwb = hw[bi * P:(bi + 1) * P]
            g = jnp.concatenate([hwb[:, t * cout:(t + 1) * cout] for t in range(9)],
                                axis=0)                                 # (9P, cout)
            outs.append(jnp.dot(a, g, preferred_element_type=jnp.float32) + bvec)
        return outs                           # B x (R, cout)

    h = _leaky(jnp.concatenate(upconv(h, a2_ref, w2c_ref, b2_ref), axis=0))  # (B*9,  128)
    h = _leaky(jnp.concatenate(upconv(h, a3_ref, w3c_ref, b3_ref), axis=0))  # (B*36, 64)
    for bi, o in enumerate(upconv(h, a4_ref, w4c_ref, b4_ref)):              # o: (121, C_in)
        dec_ref[bi] = o.T                     # channels-major store: 121 dense-ish lanes


def _run_megakernel(x_flat, w_cat, b_cat, w_hc, b_hc,
                    w2c, b2, a2, w3c, b3, a3, w4c, b4, a4):
    """Single grid-less pallas_call; every operand is a whole-array VMEM block."""
    B = x_flat.shape[0]
    c_in = b4.shape[1]
    spatial = a4.shape[0]                     # 121
    return pl.pallas_call(
        _dsn_megakernel,
        out_shape=(
            jax.ShapeDtypeStruct((B, 128), jnp.float32),            # packed tiny outputs
            jax.ShapeDtypeStruct((B, c_in, spatial), jnp.float32),  # decoder, channels-major
        ),
        compiler_params=pltpu.CompilerParams(vmem_limit_bytes=32 * 1024 * 1024),
    )(x_flat, w_cat, b_cat, w_hc, b_hc, w2c, b2, a2, w3c, b3, a3, w4c, b4, a4)


# --------------------------------------------------------------------------
# Host-side compile-time constants: batch-independent upsample+tap matrices
# --------------------------------------------------------------------------
@functools.lru_cache(maxsize=None)
def _upconv_map(h_prev, w_prev, h_new, w_new):
    """Acat[i*w_new+j, t*P + (ip*w_prev+jp)] = 1 iff output position (i,j) under conv
    tap t=(dh,dw) reads previous-grid position (ip,jp) after nearest upsampling to
    (h_new, w_new).  Column ordering (t-major) matches the in-kernel tap stacking.
    Nearest rule matches nn.Upsample: src = floor(dst * in / out)."""
    P = h_prev * w_prev
    A = np.zeros((h_new * w_new, 9 * P), np.float32)
    for t in range(9):
        dh, dw = t // 3, t % 3
        for i in range(h_new):
            for j in range(w_new):
                ii, jj = i + dh - 1, j + dw - 1
                if 0 <= ii < h_new and 0 <= jj < w_new:
                    ip = (ii * h_prev) // h_new
                    jp = (jj * w_prev) // w_new
                    A[i * w_new + j, t * P + ip * w_prev + jp] = 1.0
    return A


# --------------------------------------------------------------------------
# Parameters (deterministic synthetic init)
# --------------------------------------------------------------------------
def _rnd(key, shape, scale=0.05):
    return scale * jax.random.normal(key, shape, dtype=jnp.float32)


def init_params(key, in_ch=4, out_ch=32, num_classes=3, patch=11):
    ks = list(jax.random.split(key, 32))
    nxt = iter(ks).__next__

    def conv(co, ci, k):
        return {"w": _rnd(nxt(), (co, ci, k, k)), "b": _rnd(nxt(), (co,))}

    def lin(co, ci):
        return {"w": _rnd(nxt(), (co, ci)), "b": _rnd(nxt(), (co,))}

    def bn(c):
        return {"gamma": jnp.ones((c,), jnp.float32), "beta": jnp.zeros((c,), jnp.float32),
                "mean": jnp.zeros((c,), jnp.float32), "var": jnp.ones((c,), jnp.float32)}

    return {
        "shared_enc": conv(out_ch, in_ch, patch),
        "priv_src_enc": conv(out_ch, in_ch, patch),
        "priv_tgt_enc": conv(out_ch, in_ch, patch),
        "gate0": lin(2, in_ch),
        "gate1": lin(2, in_ch),
        "dec_conv1": conv(256, out_ch, 3), "dec_bn1": bn(256),
        "dec_conv2": conv(128, 256, 3),    "dec_bn2": bn(128),
        "dec_conv3": conv(64, 128, 3),     "dec_bn3": bn(64),
        "dec_conv4": conv(in_ch, 64, 3),
        "classifier": lin(num_classes, out_ch),
        "domain_disc": lin(2, out_ch),
    }


# --------------------------------------------------------------------------
# DSN_Gate forward (all weight folding done here; one kernel launch)
# --------------------------------------------------------------------------
def dsn_gate_forward(params, x, task_ind):
    assert task_ind in (1, 2)
    B, C_in, H, W = x.shape
    assert H == 11 and W == 11                      # patch_size == 11
    x_flat = x.reshape(B, C_in * H * W)

    priv_p = params["priv_src_enc"] if task_ind == 1 else params["priv_tgt_enc"]
    gate_p = params["gate0"] if task_ind == 1 else params["gate1"]
    C_out = params["shared_enc"]["w"].shape[0]
    ncls = params["classifier"]["w"].shape[0]
    nh = ncls + 2
    assert 2 * C_out + 2 + nh <= 128                # packed-output lane budget

    # -- experts (11x11 valid conv == matmul) + gate (GAP folded into the matmul) --
    def enc_mat(p):
        return p["w"].reshape(C_out, -1).T          # (C_in*121, C_out), (c,kh,kw) order

    w_gate_full = jnp.repeat(gate_p["w"].T, H * W, axis=0) / float(H * W)   # (C_in*121, 2)
    w_cat = jnp.concatenate([enc_mat(params["shared_enc"]), enc_mat(priv_p),
                             w_gate_full], axis=1)                          # (484, 2co+2)
    b_cat = jnp.concatenate([params["shared_enc"]["b"], priv_p["b"],
                             gate_p["b"]])[None, :]

    # -- fold eval-mode BN into conv weights / bias --
    def bn_affine(p_bn):
        inv = 1.0 / jnp.sqrt(p_bn["var"] + BN_EPS)
        scale = p_bn["gamma"] * inv
        return scale, p_bn["beta"] - p_bn["mean"] * scale

    def conv_taps_cat(p, scale=None):
        Wc = p["w"]                                  # (co, ci, 3, 3)
        co_, ci = Wc.shape[0], Wc.shape[1]
        wt = Wc.transpose(2, 3, 1, 0).reshape(9, ci, co_)   # tap t=kh*3+kw -> (ci, co)
        if scale is not None:
            wt = wt * scale[None, None, :]
        return wt.transpose(1, 0, 2).reshape(ci, 9 * co_)   # hstack taps: col = t*co + c

    # conv1 acts on a 1x1 input with pad=1 -> centre tap only; fuse with heads.
    s1, t1 = bn_affine(params["dec_bn1"])
    w1 = params["dec_conv1"]["w"][:, :, 1, 1].T * s1[None, :]               # (C_out, 256)
    b1 = params["dec_conv1"]["b"] * s1 + t1
    w_hc = jnp.concatenate([params["classifier"]["w"].T,
                            params["domain_disc"]["w"].T, w1], axis=1)      # (C_out, nh+256)
    b_hc = jnp.concatenate([params["classifier"]["b"],
                            params["domain_disc"]["b"], b1])[None, :]

    s2, t2 = bn_affine(params["dec_bn2"])
    w2c = conv_taps_cat(params["dec_conv2"], s2)                            # (256, 1152)
    b2 = (params["dec_conv2"]["b"] * s2 + t2)[None, :]
    s3, t3 = bn_affine(params["dec_bn3"])
    w3c = conv_taps_cat(params["dec_conv3"], s3)                            # (128, 576)
    b3 = (params["dec_conv3"]["b"] * s3 + t3)[None, :]
    w4c = conv_taps_cat(params["dec_conv4"])                                # (64, 9*C_in)
    b4 = params["dec_conv4"]["b"][None, :]

    # batch-independent compile-time upsample+tap selection matrices (~170 KB total)
    a2 = jnp.asarray(_upconv_map(1, 1, 3, 3))        # (9, 9)
    a3 = jnp.asarray(_upconv_map(3, 3, 6, 6))        # (36, 81)
    a4 = jnp.asarray(_upconv_map(6, 6, 11, 11))      # (121, 324)

    packed, dec = _run_megakernel(x_flat, w_cat, b_cat, w_hc, b_hc,
                                  w2c, b2, a2, w3c, b3, a3, w4c, b4, a4)

    shared = packed[:, :C_out]
    private = packed[:, C_out:2 * C_out]
    wts = packed[:, 2 * C_out:2 * C_out + 2]
    heads = packed[:, 2 * C_out + 2:2 * C_out + 2 + nh]
    class_output = heads[:, :ncls]
    domain_output = heads[:, ncls:nh]
    task_weight = wts[:, None, :]                                           # (B, 1, 2)
    decoder_output = dec.reshape(B, C_in, H, W)                             # already NCHW

    shared_features = shared.reshape(B, C_out, 1, 1)
    private_features = private.reshape(B, C_out, 1, 1)
    return (shared_features, private_features, class_output, domain_output,
            decoder_output, task_weight)


# --------------------------------------------------------------------------
# Pure-JAX reference (follows the PyTorch graph op-by-op) for validation
# --------------------------------------------------------------------------
def _reference_forward(params, x, task_ind):
    B, C_in, H, W = x.shape

    def leaky(v):
        return jnp.where(v >= 0.0, v, NEG_SLOPE * v)

    def conv2d(h, p, pad):
        return jax.lax.conv_general_dilated(
            h, p["w"], window_strides=(1, 1), padding=pad,
            dimension_numbers=("NCHW", "OIHW", "NCHW")) + p["b"][None, :, None, None]

    def bn(h, p):
        inv = 1.0 / jnp.sqrt(p["var"] + BN_EPS)
        return ((h - p["mean"][None, :, None, None]) * (p["gamma"] * inv)[None, :, None, None]
                + p["beta"][None, :, None, None])

    def upsample(h, oh, ow):
        hh, ww = h.shape[2], h.shape[3]
        hi = (jnp.arange(oh) * hh) // oh
        wi = (jnp.arange(ow) * ww) // ow
        return h[:, :, hi, :][:, :, :, wi]

    shared = leaky(conv2d(x, params["shared_enc"], "VALID"))
    priv_p = params["priv_src_enc"] if task_ind == 1 else params["priv_tgt_enc"]
    gate_p = params["gate0"] if task_ind == 1 else params["gate1"]
    private = leaky(conv2d(x, priv_p, "VALID"))

    gap = jnp.mean(x, axis=(2, 3))
    logits = gap @ gate_p["w"].T + gate_p["b"]
    tw = jax.nn.softmax(logits, axis=1)[:, None, :]
    experts = jnp.stack([shared[:, :, 0, 0], private[:, :, 0, 0]], axis=1)
    fusion = jnp.matmul(tw, experts).reshape(B, -1, 1, 1)

    h = conv2d(fusion, params["dec_conv1"], "SAME")
    h = upsample(h, 3, 3); h = leaky(bn(h, params["dec_bn1"]))
    h = conv2d(h, params["dec_conv2"], "SAME")
    h = upsample(h, 6, 6); h = leaky(bn(h, params["dec_bn2"]))
    h = conv2d(h, params["dec_conv3"], "SAME")
    h = upsample(h, 11, 11); h = leaky(bn(h, params["dec_bn3"]))
    dec = conv2d(h, params["dec_conv4"], "SAME")

    sh = shared[:, :, 0, 0]
    cls = sh @ params["classifier"]["w"].T + params["classifier"]["b"]
    dom = sh @ params["domain_disc"]["w"].T + params["domain_disc"]["b"]
    return shared, private, cls, dom, dec, tw


# --------------------------------------------------------------------------
if __name__ == "__main__":
    key = jax.random.PRNGKey(0)
    kx, kp = jax.random.split(key)

    B, C_in, C_out, num_classes, patch = 2, 4, 32, 3, 11
    x = jax.random.normal(kx, (B, C_in, patch, patch), dtype=jnp.float32)
    params = init_params(kp, in_ch=C_in, out_ch=C_out,
                         num_classes=num_classes, patch=patch)

    fwd = jax.jit(dsn_gate_forward, static_argnums=(2,))
    outs = jax.block_until_ready(fwd(params, x, 1))

    shared_f, private_f, cls_o, dom_o, dec_o, tw = outs
    assert shared_f.shape == (B, C_out, 1, 1)
    assert private_f.shape == (B, C_out, 1, 1)
    assert cls_o.shape == (B, num_classes)
    assert dom_o.shape == (B, 2)
    assert dec_o.shape == (B, C_in, patch, patch)
    assert tw.shape == (B, 1, 2)
    assert all(bool(jnp.all(jnp.isfinite(o))) for o in outs)

    # validate against a pure-JAX reference of the original graph
    refs = jax.block_until_ready(_reference_forward(params, x, 1))
    for got, ref in zip(outs, refs):
        assert got.shape == ref.shape
        err = float(jnp.max(jnp.abs(got - ref)))
        assert err < 2e-4, err

    print("KERNEL_OK")
</pallas_src>

<mosaic_0001>
module attributes {stable_mosaic.version = 11 : i64} {
  func.func @_dsn_megakernel(%arg0: memref<2x484xf32, #tpu.memory_space<vmem>>, %arg1: memref<484x66xf32, #tpu.memory_space<vmem>>, %arg2: memref<1x66xf32, #tpu.memory_space<vmem>>, %arg3: memref<32x261xf32, #tpu.memory_space<vmem>>, %arg4: memref<1x261xf32, #tpu.memory_space<vmem>>, %arg5: memref<256x1152xf32, #tpu.memory_space<vmem>>, %arg6: memref<1x128xf32, #tpu.memory_space<vmem>>, %arg7: memref<9x9xf32, #tpu.memory_space<vmem>>, %arg8: memref<128x576xf32, #tpu.memory_space<vmem>>, %arg9: memref<1x64xf32, #tpu.memory_space<vmem>>, %arg10: memref<36x81xf32, #tpu.memory_space<vmem>>, %arg11: memref<64x36xf32, #tpu.memory_space<vmem>>, %arg12: memref<1x4xf32, #tpu.memory_space<vmem>>, %arg13: memref<121x324xf32, #tpu.memory_space<vmem>>, %arg14: memref<2x128xf32, #tpu.memory_space<vmem>>, %arg15: memref<2x4x121xf32, #tpu.memory_space<vmem>>) attributes {dimension_semantics = [], scalar_prefetch = 0 : i64, scratch_operands = 0 : i64, tpu.core_type = #tpu.core_type<tc>} {
    %c0 = arith.constant 0 : index
    %c0_0 = arith.constant 0 : index
    %0 = vector.load %arg0[%c0, %c0_0] : memref<2x484xf32, #tpu.memory_space<vmem>>, vector<2x484xf32>
    %c0_1 = arith.constant 0 : index
    %c0_2 = arith.constant 0 : index
    %1 = vector.load %arg1[%c0_1, %c0_2] : memref<484x66xf32, #tpu.memory_space<vmem>>, vector<484x66xf32>
    %cst = arith.constant dense<0.000000e+00> : vector<2x66xf32>
    %2 = tpu.matmul %0, %1, %cst {dimension_numbers = #tpu.dot_dimension_numbers<[1], [0], [0], [1], [0, 0, 1, 1], [], []>} : vector<2x484xf32>, vector<484x66xf32>, vector<2x66xf32> -> vector<2x66xf32>
    %c0_3 = arith.constant 0 : index
    %c0_4 = arith.constant 0 : index
    %3 = vector.load %arg2[%c0_3, %c0_4] : memref<1x66xf32, #tpu.memory_space<vmem>>, vector<1x66xf32>
    %4 = vector.broadcast %3 : vector<1x66xf32> to vector<2x66xf32>
    %5 = arith.addf %2, %4 : vector<2x66xf32>
    %6 = vector.extract_strided_slice %5 {offsets = [0, 0], sizes = [2, 64], strides = [1, 1]} : vector<2x66xf32> to vector<2x64xf32>
    %cst_5 = arith.constant 0.000000e+00 : f32
    %7 = vector.broadcast %cst_5 : f32 to vector<2x64xf32>
    %8 = arith.cmpf oge, %6, %7 : vector<2x64xf32>
    %cst_6 = arith.constant 0.00999999977 : f32
    %9 = vector.broadcast %cst_6 : f32 to vector<2x64xf32>
    %10 = arith.mulf %9, %6 : vector<2x64xf32>
    %11 = arith.select %8, %6, %10 : vector<2x64xi1>, vector<2x64xf32>
    %12 = vector.extract_strided_slice %5 {offsets = [0, 64], sizes = [2, 2], strides = [1, 1]} : vector<2x66xf32> to vector<2x2xf32>
    %cst_7 = arith.constant dense<0xFF800000> : vector<2xf32>
    %13 = vector.multi_reduction <maximumf>, %12, %cst_7 [1] : vector<2x2xf32> to vector<2xf32>
    %14 = vector.shape_cast %13 : vector<2xf32> to vector<2x1xf32>
    %15 = vector.broadcast %14 : vector<2x1xf32> to vector<2x2xf32>
    %16 = arith.subf %12, %15 : vector<2x2xf32>
    %17 = math.exp %16 : vector<2x2xf32>
    %cst_8 = arith.constant dense<0.000000e+00> : vector<2xf32>
    %18 = vector.multi_reduction <add>, %17, %cst_8 [1] : vector<2x2xf32> to vector<2xf32>
    %19 = vector.shape_cast %18 : vector<2xf32> to vector<2x1xf32>
    %20 = vector.broadcast %19 : vector<2x1xf32> to vector<2x2xf32>
    %21 = arith.divf %17, %20 : vector<2x2xf32>
    %22 = vector.extract_strided_slice %11 {offsets = [0, 0], sizes = [2, 32], strides = [1, 1]} : vector<2x64xf32> to vector<2x32xf32>
    %23 = vector.extract_strided_slice %11 {offsets = [0, 32], sizes = [2, 32], strides = [1, 1]} : vector<2x64xf32> to vector<2x32xf32>
    %24 = vector.extract_strided_slice %21 {offsets = [0, 0], sizes = [2, 1], strides = [1, 1]} : vector<2x2xf32> to vector<2x1xf32>
    %25 = vector.broadcast %24 : vector<2x1xf32> to vector<2x32xf32>
    %26 = arith.mulf %25, %22 : vector<2x32xf32>
    %27 = vector.extract_strided_slice %21 {offsets = [0, 1], sizes = [2, 1], strides = [1, 1]} : vector<2x2xf32> to vector<2x1xf32>
    %28 = vector.broadcast %27 : vector<2x1xf32> to vector<2x32xf32>
    %29 = arith.mulf %28, %23 : vector<2x32xf32>
    %30 = arith.addf %26, %29 : vector<2x32xf32>
    %31 = tpu.concatenate %22, %30 in 0 : vector<2x32xf32>, vector<2x32xf32> -> vector<4x32xf32>
    %c0_9 = arith.constant 0 : index
    %c0_10 = arith.constant 0 : index
    %32 = vector.load %arg3[%c0_9, %c0_10] : memref<32x261xf32, #tpu.memory_space<vmem>>, vector<32x261xf32>
    %cst_11 = arith.constant dense<0.000000e+00> : vector<4x261xf32>
    %33 = tpu.matmul %31, %32, %cst_11 {dimension_numbers = #tpu.dot_dimension_numbers<[1], [0], [0], [1], [0, 0, 1, 1], [], []>} : vector<4x32xf32>, vector<32x261xf32>, vector<4x261xf32> -> vector<4x261xf32>
    %c0_12 = arith.constant 0 : index
    %c0_13 = arith.constant 0 : index
    %34 = vector.load %arg4[%c0_12, %c0_13] : memref<1x261xf32, #tpu.memory_space<vmem>>, vector<1x261xf32>
    %35 = vector.broadcast %34 : vector<1x261xf32> to vector<4x261xf32>
    %36 = arith.addf %33, %35 : vector<4x261xf32>
    %37 = vector.extract_strided_slice %36 {offsets = [0, 0], sizes = [2, 5], strides = [1, 1]} : vector<4x261xf32> to vector<2x5xf32>
    %38 = vector.extract_strided_slice %36 {offsets = [2, 5], sizes = [2, 256], strides = [1, 1]} : vector<4x261xf32> to vector<2x256xf32>
    %cst_14 = arith.constant 0.000000e+00 : f32
    %39 = vector.broadcast %cst_14 : f32 to vector<2x256xf32>
    %40 = arith.cmpf oge, %38, %39 : vector<2x256xf32>
    %cst_15 = arith.constant 0.00999999977 : f32
    %41 = vector.broadcast %cst_15 : f32 to vector<2x256xf32>
    %42 = arith.mulf %41, %38 : vector<2x256xf32>
    %43 = arith.select %40, %38, %42 : vector<2x256xi1>, vector<2x256xf32>
    %cst_16 = arith.constant 0.000000e+00 : f32
    %44 = vector.broadcast %cst_16 : f32 to vector<2x57xf32>
    %45 = tpu.concatenate %11, %21, %37, %44 in 1 : vector<2x64xf32>, vector<2x2xf32>, vector<2x5xf32>, vector<2x57xf32> -> vector<2x128xf32>
    %c0_17 = arith.constant 0 : index
    %c0_18 = arith.constant 0 : index
    %46 = vector.load %arg14[%c0_17, %c0_18] : memref<2x128xf32, #tpu.memory_space<vmem>>, vector<2x128xf32>
    tpu.vector_store %arg14[%c0_17, %c0_18], %45 {strides = array<i32>} : memref<2x128xf32, #tpu.memory_space<vmem>>, vector<2x128xf32>,
    %c0_19 = arith.constant 0 : index
    %c0_20 = arith.constant 0 : index
    %47 = vector.load %arg5[%c0_19, %c0_20] : memref<256x1152xf32, #tpu.memory_space<vmem>>, vector<256x1152xf32>
    %cst_21 = arith.constant dense<0.000000e+00> : vector<2x1152xf32>
    %48 = tpu.matmul %43, %47, %cst_21 {dimension_numbers = #tpu.dot_dimension_numbers<[1], [0], [0], [1], [0, 0, 1, 1], [], []>} : vector<2x256xf32>, vector<256x1152xf32>, vector<2x1152xf32> -> vector<2x1152xf32>
    %c0_22 = arith.constant 0 : index
    %c0_23 = arith.constant 0 : index
    %49 = vector.load %arg7[%c0_22, %c0_23] : memref<9x9xf32, #tpu.memory_space<vmem>>, vector<9x9xf32>
    %c0_24 = arith.constant 0 : index
    %c0_25 = arith.constant 0 : index
    %50 = vector.load %arg6[%c0_24, %c0_25] : memref<1x128xf32, #tpu.memory_space<vmem>>, vector<1x128xf32>
    %51 = vector.extract_strided_slice %48 {offsets = [0, 0], sizes = [1, 1152], strides = [1, 1]} : vector<2x1152xf32> to vector<1x1152xf32>
    %52 = vector.extract_strided_slice %51 {offsets = [0, 0], sizes = [1, 128], strides = [1, 1]} : vector<1x1152xf32> to vector<1x128xf32>
    %53 = vector.extract_strided_slice %51 {offsets = [0, 128], sizes = [1, 128], strides = [1, 1]} : vector<1x1152xf32> to vector<1x128xf32>
    %54 = vector.extract_strided_slice %51 {offsets = [0, 256], sizes = [1, 128], strides = [1, 1]} : vector<1x1152xf32> to vector<1x128xf32>
    %55 = vector.extract_strided_slice %51 {offsets = [0, 384], sizes = [1, 128], strides = [1, 1]} : vector<1x1152xf32> to vector<1x128xf32>
    %56 = vector.extract_strided_slice %51 {offsets = [0, 512], sizes = [1, 128], strides = [1, 1]} : vector<1x1152xf32> to vector<1x128xf32>
    %57 = vector.extract_strided_slice %51 {offsets = [0, 640], sizes = [1, 128], strides = [1, 1]} : vector<1x1152xf32> to vector<1x128xf32>
    %58 = vector.extract_strided_slice %51 {offsets = [0, 768], sizes = [1, 128], strides = [1, 1]} : vector<1x1152xf32> to vector<1x128xf32>
    %59 = vector.extract_strided_slice %51 {offsets = [0, 896], sizes = [1, 128], strides = [1, 1]} : vector<1x1152xf32> to vector<1x128xf32>
    %60 = vector.extract_strided_slice %51 {offsets = [0, 1024], sizes = [1, 128], strides = [1, 1]} : vector<1x1152xf32> to vector<1x128xf32>
    %61 = tpu.concatenate %52, %53, %54, %55, %56, %57, %58, %59, %60 in 0 : vector<1x128xf32>, vector<1x128xf32>, vector<1x128xf32>, vector<1x128xf32>, vector<1x128xf32>, vector<1x128xf32>, vector<1x128xf32>, vector<1x128xf32>, vector<1x128xf32> -> vector<9x128xf32>
    %cst_26 = arith.constant dense<0.000000e+00> : vector<9x128xf32>
    %62 = tpu.matmul %49, %61, %cst_26 {dimension_numbers = #tpu.dot_dimension_numbers<[1], [0], [0], [1], [0, 0, 1, 1], [], []>} : vector<9x9xf32>, vector<9x128xf32>, vector<9x128xf32> -> vector<9x128xf32>
    %63 = vector.broadcast %50 : vector<1x128xf32> to vector<9x128xf32>
    %64 = arith.addf %62, %63 : vector<9x128xf32>
    %65 = vector.extract_strided_slice %48 {offsets = [1, 0], sizes = [1, 1152], strides = [1, 1]} : vector<2x1152xf32> to vector<1x1152xf32>
    %66 = vector.extract_strided_slice %65 {offsets = [0, 0], sizes = [1, 128], strides = [1, 1]} : vector<1x1152xf32> to vector<1x128xf32>
    %67 = vector.extract_strided_slice %65 {offsets = [0, 128], sizes = [1, 128], strides = [1, 1]} : vector<1x1152xf32> to vector<1x128xf32>
    %68 = vector.extract_strided_slice %65 {offsets = [0, 256], sizes = [1, 128], strides = [1, 1]} : vector<1x1152xf32> to vector<1x128xf32>
    %69 = vector.extract_strided_slice %65 {offsets = [0, 384], sizes = [1, 128], strides = [1, 1]} : vector<1x1152xf32> to vector<1x128xf32>
    %70 = vector.extract_strided_slice %65 {offsets = [0, 512], sizes = [1, 128], strides = [1, 1]} : vector<1x1152xf32> to vector<1x128xf32>
    %71 = vector.extract_strided_slice %65 {offsets = [0, 640], sizes = [1, 128], strides = [1, 1]} : vector<1x1152xf32> to vector<1x128xf32>
    %72 = vector.extract_strided_slice %65 {offsets = [0, 768], sizes = [1, 128], strides = [1, 1]} : vector<1x1152xf32> to vector<1x128xf32>
    %73 = vector.extract_strided_slice %65 {offsets = [0, 896], sizes = [1, 128], strides = [1, 1]} : vector<1x1152xf32> to vector<1x128xf32>
    %74 = vector.extract_strided_slice %65 {offsets = [0, 1024], sizes = [1, 128], strides = [1, 1]} : vector<1x1152xf32> to vector<1x128xf32>
    %75 = tpu.concatenate %66, %67, %68, %69, %70, %71, %72, %73, %74 in 0 : vector<1x128xf32>, vector<1x128xf32>, vector<1x128xf32>, vector<1x128xf32>, vector<1x128xf32>, vector<1x128xf32>, vector<1x128xf32>, vector<1x128xf32>, vector<1x128xf32> -> vector<9x128xf32>
    %cst_27 = arith.constant dense<0.000000e+00> : vector<9x128xf32>
    %76 = tpu.matmul %49, %75, %cst_27 {dimension_numbers = #tpu.dot_dimension_numbers<[1], [0], [0], [1], [0, 0, 1, 1], [], []>} : vector<9x9xf32>, vector<9x128xf32>, vector<9x128xf32> -> vector<9x128xf32>
    %77 = vector.broadcast %50 : vector<1x128xf32> to vector<9x128xf32>
    %78 = arith.addf %76, %77 : vector<9x128xf32>
    %79 = tpu.concatenate %64, %78 in 0 : vector<9x128xf32>, vector<9x128xf32> -> vector<18x128xf32>
    %cst_28 = arith.constant 0.000000e+00 : f32
    %80 = vector.broadcast %cst_28 : f32 to vector<18x128xf32>
    %81 = arith.cmpf oge, %79, %80 : vector<18x128xf32>
    %cst_29 = arith.constant 0.00999999977 : f32
    %82 = vector.broadcast %cst_29 : f32 to vector<18x128xf32>
    %83 = arith.mulf %82, %79 : vector<18x128xf32>
    %84 = arith.select %81, %79, %83 : vector<18x128xi1>, vector<18x128xf32>
    %c0_30 = arith.constant 0 : index
    %c0_31 = arith.constant 0 : index
    %85 = vector.load %arg8[%c0_30, %c0_31] : memref<128x576xf32, #tpu.memory_space<vmem>>, vector<128x576xf32>
    %cst_32 = arith.constant dense<0.000000e+00> : vector<18x576xf32>
    %86 = tpu.matmul %84, %85, %cst_32 {dimension_numbers = #tpu.dot_dimension_numbers<[1], [0], [0], [1], [0, 0, 1, 1], [], []>} : vector<18x128xf32>, vector<128x576xf32>, vector<18x576xf32> -> vector<18x576xf32>
    %c0_33 = arith.constant 0 : index
    %c0_34 = arith.constant 0 : index
    %87 = vector.load %arg10[%c0_33, %c0_34] : memref<36x81xf32, #tpu.memory_space<vmem>>, vector<36x81xf32>
    %c0_35 = arith.constant 0 : index
    %c0_36 = arith.constant 0 : index
    %88 = vector.load %arg9[%c0_35, %c0_36] : memref<1x64xf32, #tpu.memory_space<vmem>>, vector<1x64xf32>
    %89 = vector.extract_strided_slice %86 {offsets = [0, 0], sizes = [9, 576], strides = [1, 1]} : vector<18x576xf32> to vector<9x576xf32>
    %90 = vector.extract_strided_slice %89 {offsets = [0, 0], sizes = [9, 64], strides = [1, 1]} : vector<9x576xf32> to vector<9x64xf32>
    %91 = vector.extract_strided_slice %89 {offsets = [0, 64], sizes = [9, 64], strides = [1, 1]} : vector<9x576xf32> to vector<9x64xf32>
    %92 = vector.extract_strided_slice %89 {offsets = [0, 128], sizes = [9, 64], strides = [1, 1]} : vector<9x576xf32> to vector<9x64xf32>
    %93 = vector.extract_strided_slice %89 {offsets = [0, 192], sizes = [9, 64], strides = [1, 1]} : vector<9x576xf32> to vector<9x64xf32>
    %94 = vector.extract_strided_slice %89 {offsets = [0, 256], sizes = [9, 64], strides = [1, 1]} : vector<9x576xf32> to vector<9x64xf32>
    %95 = vector.extract_strided_slice %89 {offsets = [0, 320], sizes = [9, 64], strides = [1, 1]} : vector<9x576xf32> to vector<9x64xf32>
    %96 = vector.extract_strided_slice %89 {offsets = [0, 384], sizes = [9, 64], strides = [1, 1]} : vector<9x576xf32> to vector<9x64xf32>
    %97 = vector.extract_strided_slice %89 {offsets = [0, 448], sizes = [9, 64], strides = [1, 1]} : vector<9x576xf32> to vector<9x64xf32>
    %98 = vector.extract_strided_slice %89 {offsets = [0, 512], sizes = [9, 64], strides = [1, 1]} : vector<9x576xf32> to vector<9x64xf32>
    %99 = tpu.concatenate %90, %91, %92, %93, %94, %95, %96, %97, %98 in 0 : vector<9x64xf32>, vector<9x64xf32>, vector<9x64xf32>, vector<9x64xf32>, vector<9x64xf32>, vector<9x64xf32>, vector<9x64xf32>, vector<9x64xf32>, vector<9x64xf32> -> vector<81x64xf32>
    %cst_37 = arith.constant dense<0.000000e+00> : vector<36x64xf32>
    %100 = tpu.matmul %87, %99, %cst_37 {dimension_numbers = #tpu.dot_dimension_numbers<[1], [0], [0], [1], [0, 0, 1, 1], [], []>} : vector<36x81xf32>, vector<81x64xf32>, vector<36x64xf32> -> vector<36x64xf32>
    %101 = vector.broadcast %88 : vector<1x64xf32> to vector<36x64xf32>
    %102 = arith.addf %100, %101 : vector<36x64xf32>
    %103 = vector.extract_strided_slice %86 {offsets = [9, 0], sizes = [9, 576], strides = [1, 1]} : vector<18x576xf32> to vector<9x576xf32>
    %104 = vector.extract_strided_slice %103 {offsets = [0, 0], sizes = [9, 64], strides = [1, 1]} : vector<9x576xf32> to vector<9x64xf32>
    %105 = vector.extract_strided_slice %103 {offsets = [0, 64], sizes = [9, 64], strides = [1, 1]} : vector<9x576xf32> to vector<9x64xf32>
    %106 = vector.extract_strided_slice %103 {offsets = [0, 128], sizes = [9, 64], strides = [1, 1]} : vector<9x576xf32> to vector<9x64xf32>
    %107 = vector.extract_strided_slice %103 {offsets = [0, 192], sizes = [9, 64], strides = [1, 1]} : vector<9x576xf32> to vector<9x64xf32>
    %108 = vector.extract_strided_slice %103 {offsets = [0, 256], sizes = [9, 64], strides = [1, 1]} : vector<9x576xf32> to vector<9x64xf32>
    %109 = vector.extract_strided_slice %103 {offsets = [0, 320], sizes = [9, 64], strides = [1, 1]} : vector<9x576xf32> to vector<9x64xf32>
    %110 = vector.extract_strided_slice %103 {offsets = [0, 384], sizes = [9, 64], strides = [1, 1]} : vector<9x576xf32> to vector<9x64xf32>
    %111 = vector.extract_strided_slice %103 {offsets = [0, 448], sizes = [9, 64], strides = [1, 1]} : vector<9x576xf32> to vector<9x64xf32>
    %112 = vector.extract_strided_slice %103 {offsets = [0, 512], sizes = [9, 64], strides = [1, 1]} : vector<9x576xf32> to vector<9x64xf32>
    %113 = tpu.concatenate %104, %105, %106, %107, %108, %109, %110, %111, %112 in 0 : vector<9x64xf32>, vector<9x64xf32>, vector<9x64xf32>, vector<9x64xf32>, vector<9x64xf32>, vector<9x64xf32>, vector<9x64xf32>, vector<9x64xf32>, vector<9x64xf32> -> vector<81x64xf32>
    %cst_38 = arith.constant dense<0.000000e+00> : vector<36x64xf32>
    %114 = tpu.matmul %87, %113, %cst_38 {dimension_numbers = #tpu.dot_dimension_numbers<[1], [0], [0], [1], [0, 0, 1, 1], [], []>} : vector<36x81xf32>, vector<81x64xf32>, vector<36x64xf32> -> vector<36x64xf32>
    %115 = vector.broadcast %88 : vector<1x64xf32> to vector<36x64xf32>
    %116 = arith.addf %114, %115 : vector<36x64xf32>
    %117 = tpu.concatenate %102, %116 in 0 : vector<36x64xf32>, vector<36x64xf32> -> vector<72x64xf32>
    %cst_39 = arith.constant 0.000000e+00 : f32
    %118 = vector.broadcast %cst_39 : f32 to vector<72x64xf32>
    %119 = arith.cmpf oge, %117, %118 : vector<72x64xf32>
    %cst_40 = arith.constant 0.00999999977 : f32
    %120 = vector.broadcast %cst_40 : f32 to vector<72x64xf32>
    %121 = arith.mulf %120, %117 : vector<72x64xf32>
    %122 = arith.select %119, %117, %121 : vector<72x64xi1>, vector<72x64xf32>
    %c0_41 = arith.constant 0 : index
    %c0_42 = arith.constant 0 : index
    %123 = vector.load %arg11[%c0_41, %c0_42] : memref<64x36xf32, #tpu.memory_space<vmem>>, vector<64x36xf32>
    %cst_43 = arith.constant dense<0.000000e+00> : vector<72x36xf32>
    %124 = tpu.matmul %122, %123, %cst_43 {dimension_numbers = #tpu.dot_dimension_numbers<[1], [0], [0], [1], [0, 0, 1, 1], [], []>} : vector<72x64xf32>, vector<64x36xf32>, vector<72x36xf32> -> vector<72x36xf32>
    %c0_44 = arith.constant 0 : index
    %c0_45 = arith.constant 0 : index
    %125 = vector.load %arg13[%c0_44, %c0_45] : memref<121x324xf32, #tpu.memory_space<vmem>>, vector<121x324xf32>
    %c0_46 = arith.constant 0 : index
    %c0_47 = arith.constant 0 : index
    %126 = vector.load %arg12[%c0_46, %c0_47] : memref<1x4xf32, #tpu.memory_space<vmem>>, vector<1x4xf32>
    %127 = vector.extract_strided_slice %124 {offsets = [0, 0], sizes = [36, 36], strides = [1, 1]} : vector<72x36xf32> to vector<36x36xf32>
    %128 = vector.extract_strided_slice %127 {offsets = [0, 0], sizes = [36, 4], strides = [1, 1]} : vector<36x36xf32> to vector<36x4xf32>
    %129 = vector.extract_strided_slice %127 {offsets = [0, 4], sizes = [36, 4], strides = [1, 1]} : vector<36x36xf32> to vector<36x4xf32>
    %130 = vector.extract_strided_slice %127 {offsets = [0, 8], sizes = [36, 4], strides = [1, 1]} : vector<36x36xf32> to vector<36x4xf32>
    %131 = vector.extract_strided_slice %127 {offsets = [0, 12], sizes = [36, 4], strides = [1, 1]} : vector<36x36xf32> to vector<36x4xf32>
    %132 = vector.extract_strided_slice %127 {offsets = [0, 16], sizes = [36, 4], strides = [1, 1]} : vector<36x36xf32> to vector<36x4xf32>
    %133 = vector.extract_strided_slice %127 {offsets = [0, 20], sizes = [36, 4], strides = [1, 1]} : vector<36x36xf32> to vector<36x4xf32>
    %134 = vector.extract_strided_slice %127 {offsets = [0, 24], sizes = [36, 4], strides = [1, 1]} : vector<36x36xf32> to vector<36x4xf32>
    %135 = vector.extract_strided_slice %127 {offsets = [0, 28], sizes = [36, 4], strides = [1, 1]} : vector<36x36xf32> to vector<36x4xf32>
    %136 = vector.extract_strided_slice %127 {offsets = [0, 32], sizes = [36, 4], strides = [1, 1]} : vector<36x36xf32> to vector<36x4xf32>
    %137 = tpu.concatenate %128, %129, %130, %131, %132, %133, %134, %135, %136 in 0 : vector<36x4xf32>, vector<36x4xf32>, vector<36x4xf32>, vector<36x4xf32>, vector<36x4xf32>, vector<36x4xf32>, vector<36x4xf32>, vector<36x4xf32>, vector<36x4xf32> -> vector<324x4xf32>
    %cst_48 = arith.constant dense<0.000000e+00> : vector<121x4xf32>
    %138 = tpu.matmul %125, %137, %cst_48 {dimension_numbers = #tpu.dot_dimension_numbers<[1], [0], [0], [1], [0, 0, 1, 1], [], []>} : vector<121x324xf32>, vector<324x4xf32>, vector<121x4xf32> -> vector<121x4xf32>
    %139 = vector.broadcast %126 : vector<1x4xf32> to vector<121x4xf32>
    %140 = arith.addf %138, %139 : vector<121x4xf32>
    %141 = vector.extract_strided_slice %124 {offsets = [36, 0], sizes = [36, 36], strides = [1, 1]} : vector<72x36xf32> to vector<36x36xf32>
    %142 = vector.extract_strided_slice %141 {offsets = [0, 0], sizes = [36, 4], strides = [1, 1]} : vector<36x36xf32> to vector<36x4xf32>
    %143 = vector.extract_strided_slice %141 {offsets = [0, 4], sizes = [36, 4], strides = [1, 1]} : vector<36x36xf32> to vector<36x4xf32>
    %144 = vector.extract_strided_slice %141 {offsets = [0, 8], sizes = [36, 4], strides = [1, 1]} : vector<36x36xf32> to vector<36x4xf32>
    %145 = vector.extract_strided_slice %141 {offsets = [0, 12], sizes = [36, 4], strides = [1, 1]} : vector<36x36xf32> to vector<36x4xf32>
    %146 = vector.extract_strided_slice %141 {offsets = [0, 16], sizes = [36, 4], strides = [1, 1]} : vector<36x36xf32> to vector<36x4xf32>
    %147 = vector.extract_strided_slice %141 {offsets = [0, 20], sizes = [36, 4], strides = [1, 1]} : vector<36x36xf32> to vector<36x4xf32>
    %148 = vector.extract_strided_slice %141 {offsets = [0, 24], sizes = [36, 4], strides = [1, 1]} : vector<36x36xf32> to vector<36x4xf32>
    %149 = vector.extract_strided_slice %141 {offsets = [0, 28], sizes = [36, 4], strides = [1, 1]} : vector<36x36xf32> to vector<36x4xf32>
    %150 = vector.extract_strided_slice %141 {offsets = [0, 32], sizes = [36, 4], strides = [1, 1]} : vector<36x36xf32> to vector<36x4xf32>
    %151 = tpu.concatenate %142, %143, %144, %145, %146, %147, %148, %149, %150 in 0 : vector<36x4xf32>, vector<36x4xf32>, vector<36x4xf32>, vector<36x4xf32>, vector<36x4xf32>, vector<36x4xf32>, vector<36x4xf32>, vector<36x4xf32>, vector<36x4xf32> -> vector<324x4xf32>
    %cst_49 = arith.constant dense<0.000000e+00> : vector<121x4xf32>
    %152 = tpu.matmul %125, %151, %cst_49 {dimension_numbers = #tpu.dot_dimension_numbers<[1], [0], [0], [1], [0, 0, 1, 1], [], []>} : vector<121x324xf32>, vector<324x4xf32>, vector<121x4xf32> -> vector<121x4xf32>
    %153 = vector.broadcast %126 : vector<1x4xf32> to vector<121x4xf32>
    %154 = arith.addf %152, %153 : vector<121x4xf32>
    %155 = tpu.transpose %140, [1, 0] : vector<121x4xf32> -> vector<4x121xf32>
    %c0_50 = arith.constant 0 : index
    %c0_51 = arith.constant 0 : index
    %c0_52 = arith.constant 0 : index
    %156 = vector.load %arg15[%c0_50, %c0_51, %c0_52] : memref<2x4x121xf32, #tpu.memory_space<vmem>>, vector<1x4x121xf32>
    %157 = vector.shape_cast %156 : vector<1x4x121xf32> to vector<4x121xf32>
    %158 = vector.shape_cast %155 : vector<4x121xf32> to vector<1x4x121xf32>
    tpu.vector_store %arg15[%c0_50, %c0_51, %c0_52], %158 {strides = array<i32>} : memref<2x4x121xf32, #tpu.memory_space<vmem>>, vector<1x4x121xf32>,
    %159 = tpu.transpose %154, [1, 0] : vector<121x4xf32> -> vector<4x121xf32>
    %c1 = arith.constant 1 : index
    %c0_53 = arith.constant 0 : index
    %c0_54 = arith.constant 0 : index
    %160 = vector.load %arg15[%c1, %c0_53, %c0_54] : memref<2x4x121xf32, #tpu.memory_space<vmem>>, vector<1x4x121xf32>
    %161 = vector.shape_cast %160 : vector<1x4x121xf32> to vector<4x121xf32>
    %162 = vector.shape_cast %159 : vector<4x121xf32> to vector<1x4x121xf32>
    tpu.vector_store %arg15[%c1, %c0_53, %c0_54], %162 {strides = array<i32>} : memref<2x4x121xf32, #tpu.memory_space<vmem>>, vector<1x4x121xf32>,
    return
  }
}

</mosaic_0001>

<llo_original>
// kernel: dsn_gate_forward.1
$region0: #{dsn_gate_forward.1}
  #allocation0 [shape = 'u32[]', space=smem, size = 0x4, offset = 0x4, fixed_abs, tag = 'smem constant byte address 0x4 - core index']
  #allocation1 [shape = 'u32[72,128]{1,0:T(1,128)}', space=vmem, size = 0x9000, scoped, tag = 'internal scratch']
  %s0 = inlined_call_operand.vmem [shape: f32[2,484], index: 0, kind: input, shape index: {}]
  %s1 = inlined_call_operand.vmem [shape: f32[484,66], index: 1, kind: input, shape index: {}]
  %s2 = inlined_call_operand.vmem [shape: f32[1,66], index: 2, kind: input, shape index: {}]
  %s3 = inlined_call_operand.vmem [shape: f32[32,261], index: 3, kind: input, shape index: {}]
  %s4 = inlined_call_operand.vmem [shape: f32[1,261], index: 4, kind: input, shape index: {}]
  %s5 = inlined_call_operand.vmem [shape: f32[256,1152], index: 5, kind: input, shape index: {}]
  %s6 = inlined_call_operand.vmem [shape: f32[1,128], index: 6, kind: input, shape index: {}]
  %s7 = inlined_call_operand.vmem [shape: f32[9,9], index: 7, kind: input, shape index: {}]
  %s8 = inlined_call_operand.vmem [shape: f32[128,576], index: 8, kind: input, shape index: {}]
  %s9 = inlined_call_operand.vmem [shape: f32[1,64], index: 9, kind: input, shape index: {}]
  %s10 = inlined_call_operand.vmem [shape: f32[36,81], index: 10, kind: input, shape index: {}]
  %s11 = inlined_call_operand.vmem [shape: f32[64,36], index: 11, kind: input, shape index: {}]
  %s12 = inlined_call_operand.vmem [shape: f32[1,4], index: 12, kind: input, shape index: {}]
  %s13 = inlined_call_operand.vmem [shape: f32[121,324], index: 13, kind: input, shape index: {}]
  %s14 = inlined_call_operand.vmem [shape: f32[2,128], index: 14, kind: output, shape index: {0}]
  %s15 = inlined_call_operand.vmem [shape: f32[2,4,121], index: 15, kind: output, shape index: {1}]
  %16 = xla_tuple %s14, %s15
  %s17 = sld [smem:[#allocation0]]
  $region74: #{dsn_gate_forward.1} parent=0
    _
  %s19 = ssub.s32 1, %s17
  %s20 = scalar_select 0, %s19, %s17
  // Predicated region
  $region2: #{dsn_gate_forward.1} parent=0 // pred_check
    _
  $region3: #{dsn_gate_forward.1} parent=0 // pred_check_branch
    %22 = sbr.rel (0) target = $region5
  $region4: #{dsn_gate_forward.1} parent=0 // pred_region
    _
  $region5: #{dsn_gate_forward.1} parent=0 // pred_fallthru
    _
  // Predicated region
  $region6: #{dsn_gate_forward.1} parent=0 // pred_check
    _
  $region7: #{dsn_gate_forward.1} parent=0 // pred_check_branch
    %24 = sbr.rel (0) target = $region9
  $region8: #{dsn_gate_forward.1} parent=0 // pred_region
    _
  $region9: #{dsn_gate_forward.1} parent=0 // pred_fallthru
    _
  // Predicated region
  $region10: #{dsn_gate_forward.1} parent=0 // pred_check
    _
  $region11: #{dsn_gate_forward.1} parent=0 // pred_check_branch
    %26 = sbr.rel (0) target = $region13
  $region12: #{dsn_gate_forward.1} parent=0 // pred_region
    _
  $region13: #{dsn_gate_forward.1} parent=0 // pred_fallthru
    _
  // Predicated region
  $region14: #{dsn_gate_forward.1} parent=0 // pred_check
    _
  $region15: #{dsn_gate_forward.1} parent=0 // pred_check_branch
    %28 = sbr.rel (0) target = $region17
  $region16: #{dsn_gate_forward.1} parent=0 // pred_region
    _
  $region17: #{dsn_gate_forward.1} parent=0 // pred_fallthru
    _
  // Predicated region
  $region18: #{dsn_gate_forward.1} parent=0 // pred_check
    _
  $region19: #{dsn_gate_forward.1} parent=0 // pred_check_branch
    %30 = sbr.rel (0) target = $region21
  $region20: #{dsn_gate_forward.1} parent=0 // pred_region
    _
  $region21: #{dsn_gate_forward.1} parent=0 // pred_fallthru
    _
  // Predicated region
  $region22: #{dsn_gate_forward.1} parent=0 // pred_check
    _
  $region23: #{dsn_gate_forward.1} parent=0 // pred_check_branch
    %32 = sbr.rel (0) target = $region25
  $region24: #{dsn_gate_forward.1} parent=0 // pred_region
    _
  $region25: #{dsn_gate_forward.1} parent=0 // pred_fallthru
    _
  // Predicated region
  $region26: #{dsn_gate_forward.1} parent=0 // pred_check
    _
  $region27: #{dsn_gate_forward.1} parent=0 // pred_check_branch
    %34 = sbr.rel (0) target = $region29
  $region28: #{dsn_gate_forward.1} parent=0 // pred_region
    _
  $region29: #{dsn_gate_forward.1} parent=0 // pred_fallthru
    _
  // Predicated region
  $region30: #{dsn_gate_forward.1} parent=0 // pred_check
    _
  $region31: #{dsn_gate_forward.1} parent=0 // pred_check_branch
    %36 = sbr.rel (0) target = $region33
  $region32: #{dsn_gate_forward.1} parent=0 // pred_region
    _
  $region33: #{dsn_gate_forward.1} parent=0 // pred_fallthru
    _
  // Predicated region
  $region34: #{dsn_gate_forward.1} parent=0 // pred_check
    _
  $region35: #{dsn_gate_forward.1} parent=0 // pred_check_branch
    %38 = sbr.rel (0) target = $region37
  $region36: #{dsn_gate_forward.1} parent=0 // pred_region
    _
  $region37: #{dsn_gate_forward.1} parent=0 // pred_fallthru
    _
  // Predicated region
  $region38: #{dsn_gate_forward.1} parent=0 // pred_check
    _
  $region39: #{dsn_gate_forward.1} parent=0 // pred_check_branch
    %40 = sbr.rel (0) target = $region41
  $region40: #{dsn_gate_forward.1} parent=0 // pred_region
    _
  $region41: #{dsn_gate_forward.1} parent=0 // pred_fallthru
    _
  // Predicated region
  $region42: #{dsn_gate_forward.1} parent=0 // pred_check
    _
  $region43: #{dsn_gate_forward.1} parent=0 // pred_check_branch
    %42 = sbr.rel (0) target = $region45
  $region44: #{dsn_gate_forward.1} parent=0 // pred_region
    _
  $region45: #{dsn_gate_forward.1} parent=0 // pred_fallthru
    _
  // Predicated region
  $region46: #{dsn_gate_forward.1} parent=0 // pred_check
    _
  $region47: #{dsn_gate_forward.1} parent=0 // pred_check_branch
    %44 = sbr.rel (0) target = $region49
  $region48: #{dsn_gate_forward.1} parent=0 // pred_region
    _
  $region49: #{dsn_gate_forward.1} parent=0 // pred_fallthru
    _
  // Predicated region
  $region50: #{dsn_gate_forward.1} parent=0 // pred_check
    _
  $region51: #{dsn_gate_forward.1} parent=0 // pred_check_branch
    %46 = sbr.rel (0) target = $region53
  $region52: #{dsn_gate_forward.1} parent=0 // pred_region
    _
  $region53: #{dsn_gate_forward.1} parent=0 // pred_fallthru
    _
  // Predicated region
  $region54: #{dsn_gate_forward.1} parent=0 // pred_check
    _
  $region55: #{dsn_gate_forward.1} parent=0 // pred_check_branch
    %48 = sbr.rel (0) target = $region57
  $region56: #{dsn_gate_forward.1} parent=0 // pred_region
    _
  $region57: #{dsn_gate_forward.1} parent=0 // pred_fallthru
    _
  %v49 = vld [vmem:[%s0] sm:$0xff]
  %v50 = vld [vmem:[%s1] sm:$0xff]
  %v51 = vld [vmem:[%s1 + $0x8] sm:$0xff]
  %v52 = vld [vmem:[%s1 + $0x10] sm:$0xff]
  %v53 = vld [vmem:[%s1 + $0x18] sm:$0xff]
  %v54 = vld [vmem:[%s1 + $0x20] sm:$0xff]
  %v55 = vld [vmem:[%s1 + $0x28] sm:$0xff]
  %v56 = vld [vmem:[%s1 + $0x30] sm:$0xff]
  %v57 = vld [vmem:[%s1 + $0x38] sm:$0xff]
  %v58 = vld [vmem:[%s1 + $0x40] sm:$0xff]
  %v59 = vld [vmem:[%s1 + $0x48] sm:$0xff]
  %v60 = vld [vmem:[%s1 + $0x50] sm:$0xff]
  %v61 = vld [vmem:[%s1 + $0x58] sm:$0xff]
  %v62 = vld [vmem:[%s1 + $0x60] sm:$0xff]
  %v63 = vld [vmem:[%s1 + $0x68] sm:$0xff]
  %v64 = vld [vmem:[%s1 + $0x70] sm:$0xff]
  %v65 = vld [vmem:[%s1 + $0x78] sm:$0xff]
  %v66 = vld [vmem:[%s1 + $0x80] sm:$0xff]
  %v67 = vld [vmem:[%s1 + $0x88] sm:$0xff]
  %v68 = vld [vmem:[%s1 + $0x90] sm:$0xff]
  %v69 = vld [vmem:[%s1 + $0x98] sm:$0xff]
  %v70 = vld [vmem:[%s1 + $0xa0] sm:$0xff]
  %v71 = vld [vmem:[%s1 + $0xa8] sm:$0xff]
  %v72 = vld [vmem:[%s1 + $0xb0] sm:$0xff]
  %v73 = vld [vmem:[%s1 + $0xb8] sm:$0xff]
  %v74 = vld [vmem:[%s1 + $0xc0] sm:$0xff]
  %v75 = vld [vmem:[%s1 + $0xc8] sm:$0xff]
  %v76 = vld [vmem:[%s1 + $0xd0] sm:$0xff]
  %v77 = vld [vmem:[%s1 + $0xd8] sm:$0xff]
  %v78 = vld [vmem:[%s1 + $0xe0] sm:$0xff]
  %v79 = vld [vmem:[%s1 + $0xe8] sm:$0xff]
  %v80 = vld [vmem:[%s1 + $0xf0] sm:$0xff]
  %v81 = vld [vmem:[%s1 + $0xf8] sm:$0xff]
  %v82 = vld [vmem:[%s1 + $0x100] sm:$0xff]
  %v83 = vld [vmem:[%s1 + $0x108] sm:$0xff]
  %v84 = vld [vmem:[%s1 + $0x110] sm:$0xff]
  %v85 = vld [vmem:[%s1 + $0x118] sm:$0xff]
  %v86 = vld [vmem:[%s1 + $0x120] sm:$0xff]
  %v87 = vld [vmem:[%s1 + $0x128] sm:$0xff]
  %v88 = vld [vmem:[%s1 + $0x130] sm:$0xff]
  %v89 = vld [vmem:[%s1 + $0x138] sm:$0xff]
  %v90 = vld [vmem:[%s1 + $0x140] sm:$0xff]
  %v91 = vld [vmem:[%s1 + $0x148] sm:$0xff]
  %v92 = vld [vmem:[%s1 + $0x150] sm:$0xff]
  %v93 = vld [vmem:[%s1 + $0x158] sm:$0xff]
  %v94 = vld [vmem:[%s1 + $0x160] sm:$0xff]
  %v95 = vld [vmem:[%s1 + $0x168] sm:$0xff]
  %v96 = vld [vmem:[%s1 + $0x170] sm:$0xff]
  %v97 = vld [vmem:[%s1 + $0x178] sm:$0xff]
  %v98 = vld [vmem:[%s1 + $0x180] sm:$0xff]
  %v99 = vld [vmem:[%s1 + $0x188] sm:$0xff]
  %v100 = vld [vmem:[%s1 + $0x190] sm:$0xff]
  %v101 = vld [vmem:[%s1 + $0x198] sm:$0xff]
  %v102 = vld [vmem:[%s1 + $0x1a0] sm:$0xff]
  %v103 = vld [vmem:[%s1 + $0x1a8] sm:$0xff]
  %v104 = vld [vmem:[%s1 + $0x1b0] sm:$0xff]
  %v105 = vld [vmem:[%s1 + $0x1b8] sm:$0xff]
  %v106 = vld [vmem:[%s1 + $0x1c0] sm:$0xff]
  %v107 = vld [vmem:[%s1 + $0x1c8] sm:$0xff]
  %v108 = vld [vmem:[%s1 + $0x1d0] sm:$0xff]
  %v109 = vld [vmem:[%s1 + $0x1d8] sm:$0xff]
  %v110 = vld [vmem:[%s1 + $0x1e0] sm:$0xf]
  %v111 = vld [vmem:[%s2] sm:$0x1]
  %v113 = vperm.slane %v111, 0
  %116 = vst [vmem:[#allocation1] ss:$4 sm:$0xff] %v49
  %v117 = vld.sshfl [vmem:[#allocation1] sm:$0xff pattern:$0x73625140]
  %v118 = vld.sshfl [vmem:[#allocation1 + $0x8] sm:$0xff pattern:$0x73625140]
  %v119 = vld.sshfl [vmem:[#allocation1 + $0x10] sm:$0xff pattern:$0x73625140]
  %v120 = vld.sshfl [vmem:[#allocation1 + $0x18] sm:$0xff pattern:$0x73625140]
  %vm124 = vcmask 818176
  %v125 = vsel %vm124, %v120, 0
  %vm127 = vcmask 1043456
  %v129 = vsel %vm127, %v110, 0
  %131 = vmatpush.msra.mxu0 %v65
  %132 = vmatpush.msra.mxu0 %v64
  %133 = vmatpush.msra.mxu0 %v63
  %134 = vmatpush.msra.mxu0 %v62
  %135 = vmatpush.msra.mxu0 %v61
  %136 = vmatpush.msra.mxu0 %v60
  %137 = vmatpush.msra.mxu0 %v59
  %138 = vmatpush.msra.mxu0 %v58
  %139 = vmatpush.msra.mxu0 %v57
  %140 = vmatpush.msra.mxu0 %v56
  %141 = vmatpush.msra.mxu0 %v55
  %142 = vmatpush.msra.mxu0 %v54
  %143 = vmatpush.msra.mxu0 %v53
  %144 = vmatpush.msra.mxu0 %v52
  %145 = vmatpush.msra.mxu0 %v51
  %146 = vmatpush.msra.mxu0 %v50
  %147 = vmatmul.f32.gmra.mxu0 %v117
  %v148 = vpop.f32.mrf.mxu0
  %v149 = vadd.f32 %v113, %v148
  %150 = vdwg.mxu0
  %151 = vmatpush.msra.mxu0 %v81
  %152 = vmatpush.msra.mxu0 %v80
  %153 = vmatpush.msra.mxu0 %v79
  %154 = vmatpush.msra.mxu0 %v78
  %155 = vmatpush.msra.mxu0 %v77
  %156 = vmatpush.msra.mxu0 %v76
  %157 = vmatpush.msra.mxu0 %v75
  %158 = vmatpush.msra.mxu0 %v74
  %159 = vmatpush.msra.mxu0 %v73
  %160 = vmatpush.msra.mxu0 %v72
  %161 = vmatpush.msra.mxu0 %v71
  %162 = vmatpush.msra.mxu0 %v70
  %163 = vmatpush.msra.mxu0 %v69
  %164 = vmatpush.msra.mxu0 %v68
  %165 = vmatpush.msra.mxu0 %v67
  %166 = vmatpush.msra.mxu0 %v66
  %167 = vmatmul.f32.gmra.mxu0 %v118
  %v168 = vpop.f32.mrf.mxu0
  %v169 = vadd.f32 %v149, %v168
  %170 = vdwg.mxu0
  %171 = vmatpush.msra.mxu0 %v97
  %172 = vmatpush.msra.mxu0 %v96
  %173 = vmatpush.msra.mxu0 %v95
  %174 = vmatpush.msra.mxu0 %v94
  %175 = vmatpush.msra.mxu0 %v93
  %176 = vmatpush.msra.mxu0 %v92
  %177 = vmatpush.msra.mxu0 %v91
  %178 = vmatpush.msra.mxu0 %v90
  %179 = vmatpush.msra.mxu0 %v89
  %180 = vmatpush.msra.mxu0 %v88
  %181 = vmatpush.msra.mxu0 %v87
  %182 = vmatpush.msra.mxu0 %v86
  %183 = vmatpush.msra.mxu0 %v85
  %184 = vmatpush.msra.mxu0 %v84
  %185 = vmatpush.msra.mxu0 %v83
  %186 = vmatpush.msra.mxu0 %v82
  %187 = vmatmul.f32.gmra.mxu0 %v119
  %v188 = vpop.f32.mrf.mxu0
  %v189 = vadd.f32 %v169, %v188
  %190 = vdwg.mxu0
  %191 = vmatpush.msra.mxu0 0.0
  %192 = vmatpush.msra.mxu0 0.0
  %193 = vmatpush.msra.mxu0 0.0
  %194 = vmatpush.msra.mxu0 %v129
  %195 = vmatpush.msra.mxu0 %v109
  %196 = vmatpush.msra.mxu0 %v108
  %197 = vmatpush.msra.mxu0 %v107
  %198 = vmatpush.msra.mxu0 %v106
  %199 = vmatpush.msra.mxu0 %v105
  %200 = vmatpush.msra.mxu0 %v104
  %201 = vmatpush.msra.mxu0 %v103
  %202 = vmatpush.msra.mxu0 %v102
  %203 = vmatpush.msra.mxu0 %v101
  %204 = vmatpush.msra.mxu0 %v100
  %205 = vmatpush.msra.mxu0 %v99
  %206 = vmatpush.msra.mxu0 %v98
  %207 = vmatmul.f32.gmra.mxu0 %v125
  %v208 = vpop.f32.mrf.mxu0
  %v209 = vadd.f32 %v189, %v208
  %210 = vdwg.mxu0
  %vm211 = vcmp.ge.f32.partialorder %v209, 0.0
  %v212 = vmul.f32 %v209, 0.01
  %v213 = vsel %vm211, %v209, %v212
  %vm214 = vcmask 534016
  %v215 = vsel %vm214, %v209, -inf
  %216 = vmax.xlane.f32.xlu0 %v215
  %v217 = vpop.xlane.xlu0 %216
  %v218 = vsub.f32 %v209, %v217
  %v219 = vmul.f32 %v218, 1.442695
  %v220 = vpow.pop %v219
  %222 = vrot.lane.b32.xlu0 %v220, 64
  %v223 = vpop.permute.xlu0 %222
  %vm225 = vcmask 9216
  %v226 = vsel %vm225, %v223, 0.0
  %227 = vadd.xlane.f32.xlu0 %v226
  %v228 = vpop.xlane.xlu0 %227
  %v229 = vrcp.pop %v228
  %v230 = vmul.f32 %v228, %v229
  %v231 = vsub.f32 1.0, %v230
  %v232 = vmul.f32 %v229, %v231
  %v233 = vadd.f32 %v229, %v232
  %vm234 = vweird.f32 %v228
  %vm235 = vweird.f32 %v229
  %vm236 = vmor %vm234, %vm235
  %v237 = vsel %vm236, %v229, %v233
  %v238 = vand.u32 2147483647, %v228
  %vm239 = vcmp.eq.f32.partialorder %v238, 8.507059e+37
  %v240 = vand.u32 %v228, 2147483648
  %v241 = vor.u32 1.1754944e-38, %v240
  %v242 = vsel %vm239, %v241, %v237
  %v243 = vmul.f32 %v220, %v242
  %245 = vset.pattern.permute.xlu0 64
  %246 = vperm.xlu0 %245, %v243
  %v247 = vpop.permute.xlu0 %246
  %v249 = vmul.f32 %v247, %v213
  %250 = vset.pattern.permute.xlu0 65
  %251 = vperm.xlu0 %250, %v243
  %v252 = vpop.permute.xlu0 %251
  %v254 = vmul.f32 %v252, %v213
  %256 = vrot.lane.b32.xlu0 %v254, 96
  %v257 = vpop.permute.xlu0 %256
  %v259 = vadd.f32 %v249, %v257
  %v261 = vrot.slane %v259, 6
  %vm263 = vcmask 1041408
  %v264 = vsel %vm263, %v213, %v261
  %v265 = vld [vmem:[%s3] sm:$0xff]
  %v266 = vld [vmem:[%s3 + $0x8] sm:$0xff]
  %v267 = vld [vmem:[%s3 + $0x10] sm:$0xff]
  %v268 = vld [vmem:[%s3 + $0x18] sm:$0xff]
  %v269 = vld [vmem:[%s3 + $0x20] sm:$0xff]
  %v270 = vld [vmem:[%s3 + $0x28] sm:$0xff]
  %v271 = vld [vmem:[%s3 + $0x30] sm:$0xff]
  %v272 = vld [vmem:[%s3 + $0x38] sm:$0xff]
  %v273 = vld [vmem:[%s3 + $0x40] sm:$0xff]
  %v274 = vld [vmem:[%s3 + $0x48] sm:$0xff]
  %v275 = vld [vmem:[%s3 + $0x50] sm:$0xff]
  %v276 = vld [vmem:[%s3 + $0x58] sm:$0xff]
  %v277 = vld [vmem:[%s4] sm:$0x7]
  %v279 = vperm.slane %v277, 0
  %v280 = vperm.slane %v277, 1
  %v281 = vperm.slane %v277, 2
  %vm285 = vcmask 261120
  %v287 = vsel %vm285, %v264, 0
  %289 = vmatpush.msra.mxu0 0.0
  %290 = vmatpush.msra.mxu0 0.0
  %291 = vmatpush.msra.mxu0 0.0
  %292 = vmatpush.msra.mxu0 0.0
  %293 = vmatpush.msra.mxu0 0.0
  %294 = vmatpush.msra.mxu0 0.0
  %295 = vmatpush.msra.mxu0 0.0
  %296 = vmatpush.msra.mxu0 0.0
  %297 = vmatpush.msra.mxu0 0.0
  %298 = vmatpush.msra.mxu0 0.0
  %299 = vmatpush.msra.mxu0 0.0
  %300 = vmatpush.msra.mxu0 0.0
  %301 = vmatpush.msra.mxu0 %v274
  %302 = vmatpush.msra.mxu0 %v271
  %303 = vmatpush.msra.mxu0 %v268
  %304 = vmatpush.msra.mxu0 %v265
  %305 = vmatmul.f32.gmra.mxu0 %v287
  %v306 = vpop.f32.mrf.mxu0
  %v307 = vadd.f32 %v279, %v306
  %308 = vdwg.mxu0
  %309 = vmatpush.msra.mxu0 0.0
  %310 = vmatpush.msra.mxu0 0.0
  %311 = vmatpush.msra.mxu0 0.0
  %312 = vmatpush.msra.mxu0 0.0
  %313 = vmatpush.msra.mxu0 0.0
  %314 = vmatpush.msra.mxu0 0.0
  %315 = vmatpush.msra.mxu0 0.0
  %316 = vmatpush.msra.mxu0 0.0
  %317 = vmatpush.msra.mxu0 0.0
  %318 = vmatpush.msra.mxu0 0.0
  %319 = vmatpush.msra.mxu0 0.0
  %320 = vmatpush.msra.mxu0 0.0
  %321 = vmatpush.msra.mxu0 %v275
  %322 = vmatpush.msra.mxu0 %v272
  %323 = vmatpush.msra.mxu0 %v269
  %324 = vmatpush.msra.mxu0 %v266
  %325 = vmatmul.f32.gmra.mxu0 %v287
  %v326 = vpop.f32.mrf.mxu0
  %v327 = vadd.f32 %v280, %v326
  %328 = vdwg.mxu0
  %329 = vmatpush.msra.mxu0 0.0
  %330 = vmatpush.msra.mxu0 0.0
  %331 = vmatpush.msra.mxu0 0.0
  %332 = vmatpush.msra.mxu0 0.0
  %333 = vmatpush.msra.mxu0 0.0
  %334 = vmatpush.msra.mxu0 0.0
  %335 = vmatpush.msra.mxu0 0.0
  %336 = vmatpush.msra.mxu0 0.0
  %337 = vmatpush.msra.mxu0 0.0
  %338 = vmatpush.msra.mxu0 0.0
  %339 = vmatpush.msra.mxu0 0.0
  %340 = vmatpush.msra.mxu0 0.0
  %341 = vmatpush.msra.mxu0 %v276
  %342 = vmatpush.msra.mxu0 %v273
  %343 = vmatpush.msra.mxu0 %v270
  %344 = vmatpush.msra.mxu0 %v267
  %345 = vmatmul.f32.gmra.mxu0 %v287
  %v346 = vpop.f32.mrf.mxu0
  %v347 = vadd.f32 %v281, %v346
  %348 = vdwg.mxu0
  %vm349 = vcmp.ge.f32.partialorder %v307, 0.0
  %vm350 = vcmp.ge.f32.partialorder %v327, 0.0
  %vm351 = vcmp.ge.f32.partialorder %v347, 0.0
  %v352 = vmul.f32 %v307, 0.01
  %v353 = vmul.f32 %v327, 0.01
  %v354 = vmul.f32 %v347, 0.01
  %v355 = vsel %vm349, %v307, %v352
  %v356 = vsel %vm350, %v327, %v353
  %v357 = vsel %vm351, %v347, %v354
  %359 = vrot.lane.b32.xlu0 %v307, 66
  %v360 = vpop.permute.xlu0 %359
  %vm362 = vcmask 523264
  %v363 = vsel %vm362, %v213, %v243
  %vm364 = vcmask 539648
  %v365 = vsel %vm364, %v363, %v360
  %vm366 = vcmask 580608
  %v367 = vsel %vm366, %v365, 0.0
  %368 = vst [vmem:[%s14] sm:$0x3] %v367
  %v369 = vld [vmem:[%s5] sm:$0xff]
  %v370 = vld [vmem:[%s5 + $0x8] sm:$0xff]
  %v371 = vld [vmem:[%s5 + $0x10] sm:$0xff]
  %v372 = vld [vmem:[%s5 + $0x18] sm:$0xff]
  %v373 = vld [vmem:[%s5 + $0x20] sm:$0xff]
  %v374 = vld [vmem:[%s5 + $0x28] sm:$0xff]
  %v375 = vld [vmem:[%s5 + $0x30] sm:$0xff]
  %v376 = vld [vmem:[%s5 + $0x38] sm:$0xff]
  %v377 = vld [vmem:[%s5 + $0x40] sm:$0xff]
  %v378 = vld [vmem:[%s5 + $0x48] sm:$0xff]
  %v379 = vld [vmem:[%s5 + $0x50] sm:$0xff]
  %v380 = vld [vmem:[%s5 + $0x58] sm:$0xff]
  %v381 = vld [vmem:[%s5 + $0x60] sm:$0xff]
  %v382 = vld [vmem:[%s5 + $0x68] sm:$0xff]
  %v383 = vld [vmem:[%s5 + $0x70] sm:$0xff]
  %v384 = vld [vmem:[%s5 + $0x78] sm:$0xff]
  %v385 = vld [vmem:[%s5 + $0x80] sm:$0xff]
  %v386 = vld [vmem:[%s5 + $0x88] sm:$0xff]
  %v387 = vld [vmem:[%s5 + $0x90] sm:$0xff]
  %v388 = vld [vmem:[%s5 + $0x98] sm:$0xff]
  %v389 = vld [vmem:[%s5 + $0xa0] sm:$0xff]
  %v390 = vld [vmem:[%s5 + $0xa8] sm:$0xff]
  %v391 = vld [vmem:[%s5 + $0xb0] sm:$0xff]
  %v392 = vld [vmem:[%s5 + $0xb8] sm:$0xff]
  %v393 = vld [vmem:[%s5 + $0xc0] sm:$0xff]
  %v394 = vld [vmem:[%s5 + $0xc8] sm:$0xff]
  %v395 = vld [vmem:[%s5 + $0xd0] sm:$0xff]
  %v396 = vld [vmem:[%s5 + $0xd8] sm:$0xff]
  %v397 = vld [vmem:[%s5 + $0xe0] sm:$0xff]
  %v398 = vld [vmem:[%s5 + $0xe8] sm:$0xff]
  %v399 = vld [vmem:[%s5 + $0xf0] sm:$0xff]
  %v400 = vld [vmem:[%s5 + $0xf8] sm:$0xff]
  %v401 = vld [vmem:[%s5 + $0x100] sm:$0xff]
  %v402 = vld [vmem:[%s5 + $0x108] sm:$0xff]
  %v403 = vld [vmem:[%s5 + $0x110] sm:$0xff]
  %v404 = vld [vmem:[%s5 + $0x118] sm:$0xff]
  %v405 = vld [vmem:[%s5 + $0x120] sm:$0xff]
  %v406 = vld [vmem:[%s5 + $0x128] sm:$0xff]
  %v407 = vld [vmem:[%s5 + $0x130] sm:$0xff]
  %v408 = vld [vmem:[%s5 + $0x138] sm:$0xff]
  %v409 = vld [vmem:[%s5 + $0x140] sm:$0xff]
  %v410 = vld [vmem:[%s5 + $0x148] sm:$0xff]
  %v411 = vld [vmem:[%s5 + $0x150] sm:$0xff]
  %v412 = vld [vmem:[%s5 + $0x158] sm:$0xff]
  %v413 = vld [vmem:[%s5 + $0x160] sm:$0xff]
  %v414 = vld [vmem:[%s5 + $0x168] sm:$0xff]
  %v415 = vld [vmem:[%s5 + $0x170] sm:$0xff]
  %v416 = vld [vmem:[%s5 + $0x178] sm:$0xff]
  %v417 = vld [vmem:[%s5 + $0x180] sm:$0xff]
  %v418 = vld [vmem:[%s5 + $0x188] sm:$0xff]
  %v419 = vld [vmem:[%s5 + $0x190] sm:$0xff]
  %v420 = vld [vmem:[%s5 + $0x198] sm:$0xff]
  %v421 = vld [vmem:[%s5 + $0x1a0] sm:$0xff]
  %v422 = vld [vmem:[%s5 + $0x1a8] sm:$0xff]
  %v423 = vld [vmem:[%s5 + $0x1b0] sm:$0xff]
  %v424 = vld [vmem:[%s5 + $0x1b8] sm:$0xff]
  %v425 = vld [vmem:[%s5 + $0x1c0] sm:$0xff]
  %v426 = vld [vmem:[%s5 + $0x1c8] sm:$0xff]
  %v427 = vld [vmem:[%s5 + $0x1d0] sm:$0xff]
  %v428 = vld [vmem:[%s5 + $0x1d8] sm:$0xff]
  %v429 = vld [vmem:[%s5 + $0x1e0] sm:$0xff]
  %v430 = vld [vmem:[%s5 + $0x1e8] sm:$0xff]
  %v431 = vld [vmem:[%s5 + $0x1f0] sm:$0xff]
  %v432 = vld [vmem:[%s5 + $0x1f8] sm:$0xff]
  %v433 = vld [vmem:[%s5 + $0x200] sm:$0xff]
  %v434 = vld [vmem:[%s5 + $0x208] sm:$0xff]
  %v435 = vld [vmem:[%s5 + $0x210] sm:$0xff]
  %v436 = vld [vmem:[%s5 + $0x218] sm:$0xff]
  %v437 = vld [vmem:[%s5 + $0x220] sm:$0xff]
  %v438 = vld [vmem:[%s5 + $0x228] sm:$0xff]
  %v439 = vld [vmem:[%s5 + $0x230] sm:$0xff]
  %v440 = vld [vmem:[%s5 + $0x238] sm:$0xff]
  %v441 = vld [vmem:[%s5 + $0x240] sm:$0xff]
  %v442 = vld [vmem:[%s5 + $0x248] sm:$0xff]
  %v443 = vld [vmem:[%s5 + $0x250] sm:$0xff]
  %v444 = vld [vmem:[%s5 + $0x258] sm:$0xff]
  %v445 = vld [vmem:[%s5 + $0x260] sm:$0xff]
  %v446 = vld [vmem:[%s5 + $0x268] sm:$0xff]
  %v447 = vld [vmem:[%s5 + $0x270] sm:$0xff]
  %v448 = vld [vmem:[%s5 + $0x278] sm:$0xff]
  %v449 = vld [vmem:[%s5 + $0x280] sm:$0xff]
  %v450 = vld [vmem:[%s5 + $0x288] sm:$0xff]
  %v451 = vld [vmem:[%s5 + $0x290] sm:$0xff]
  %v452 = vld [vmem:[%s5 + $0x298] sm:$0xff]
  %v453 = vld [vmem:[%s5 + $0x2a0] sm:$0xff]
  %v454 = vld [vmem:[%s5 + $0x2a8] sm:$0xff]
  %v455 = vld [vmem:[%s5 + $0x2b0] sm:$0xff]
  %v456 = vld [vmem:[%s5 + $0x2b8] sm:$0xff]
  %v457 = vld [vmem:[%s5 + $0x2c0] sm:$0xff]
  %v458 = vld [vmem:[%s5 + $0x2c8] sm:$0xff]
  %v459 = vld [vmem:[%s5 + $0x2d0] sm:$0xff]
  %v460 = vld [vmem:[%s5 + $0x2d8] sm:$0xff]
  %v461 = vld [vmem:[%s5 + $0x2e0] sm:$0xff]
  %v462 = vld [vmem:[%s5 + $0x2e8] sm:$0xff]
  %v463 = vld [vmem:[%s5 + $0x2f0] sm:$0xff]
  %v464 = vld [vmem:[%s5 + $0x2f8] sm:$0xff]
  %v465 = vld [vmem:[%s5 + $0x300] sm:$0xff]
  %v466 = vld [vmem:[%s5 + $0x308] sm:$0xff]
  %v467 = vld [vmem:[%s5 + $0x310] sm:$0xff]
  %v468 = vld [vmem:[%s5 + $0x318] sm:$0xff]
  %v469 = vld [vmem:[%s5 + $0x320] sm:$0xff]
  %v470 = vld [vmem:[%s5 + $0x328] sm:$0xff]
  %v471 = vld [vmem:[%s5 + $0x330] sm:$0xff]
  %v472 = vld [vmem:[%s5 + $0x338] sm:$0xff]
  %v473 = vld [vmem:[%s5 + $0x340] sm:$0xff]
  %v474 = vld [vmem:[%s5 + $0x348] sm:$0xff]
  %v475 = vld [vmem:[%s5 + $0x350] sm:$0xff]
  %v476 = vld [vmem:[%s5 + $0x358] sm:$0xff]
  %v477 = vld [vmem:[%s5 + $0x360] sm:$0xff]
  %v478 = vld [vmem:[%s5 + $0x368] sm:$0xff]
  %v479 = vld [vmem:[%s5 + $0x370] sm:$0xff]
  %v480 = vld [vmem:[%s5 + $0x378] sm:$0xff]
  %v481 = vld [vmem:[%s5 + $0x380] sm:$0xff]
  %v482 = vld [vmem:[%s5 + $0x388] sm:$0xff]
  %v483 = vld [vmem:[%s5 + $0x390] sm:$0xff]
  %v484 = vld [vmem:[%s5 + $0x398] sm:$0xff]
  %v485 = vld [vmem:[%s5 + $0x3a0] sm:$0xff]
  %v486 = vld [vmem:[%s5 + $0x3a8] sm:$0xff]
  %v487 = vld [vmem:[%s5 + $0x3b0] sm:$0xff]
  %v488 = vld [vmem:[%s5 + $0x3b8] sm:$0xff]
  %v489 = vld [vmem:[%s5 + $0x3c0] sm:$0xff]
  %v490 = vld [vmem:[%s5 + $0x3c8] sm:$0xff]
  %v491 = vld [vmem:[%s5 + $0x3d0] sm:$0xff]
  %v492 = vld [vmem:[%s5 + $0x3d8] sm:$0xff]
  %v493 = vld [vmem:[%s5 + $0x3e0] sm:$0xff]
  %v494 = vld [vmem:[%s5 + $0x3e8] sm:$0xff]
  %v495 = vld [vmem:[%s5 + $0x3f0] sm:$0xff]
  %v496 = vld [vmem:[%s5 + $0x3f8] sm:$0xff]
  %v497 = vld [vmem:[%s5 + $0x400] sm:$0xff]
  %v498 = vld [vmem:[%s5 + $0x408] sm:$0xff]
  %v499 = vld [vmem:[%s5 + $0x410] sm:$0xff]
  %v500 = vld [vmem:[%s5 + $0x418] sm:$0xff]
  %v501 = vld [vmem:[%s5 + $0x420] sm:$0xff]
  %v502 = vld [vmem:[%s5 + $0x428] sm:$0xff]
  %v503 = vld [vmem:[%s5 + $0x430] sm:$0xff]
  %v504 = vld [vmem:[%s5 + $0x438] sm:$0xff]
  %v505 = vld [vmem:[%s5 + $0x440] sm:$0xff]
  %v506 = vld [vmem:[%s5 + $0x448] sm:$0xff]
  %v507 = vld [vmem:[%s5 + $0x450] sm:$0xff]
  %v508 = vld [vmem:[%s5 + $0x458] sm:$0xff]
  %v509 = vld [vmem:[%s5 + $0x460] sm:$0xff]
  %v510 = vld [vmem:[%s5 + $0x468] sm:$0xff]
  %v511 = vld [vmem:[%s5 + $0x470] sm:$0xff]
  %v512 = vld [vmem:[%s5 + $0x478] sm:$0xff]
  %v513 = vld [vmem:[%s5 + $0x480] sm:$0xff]
  %v514 = vld [vmem:[%s5 + $0x488] sm:$0xff]
  %v515 = vld [vmem:[%s5 + $0x490] sm:$0xff]
  %v516 = vld [vmem:[%s5 + $0x498] sm:$0xff]
  %v517 = vld [vmem:[%s5 + $0x4a0] sm:$0xff]
  %v518 = vld [vmem:[%s5 + $0x4a8] sm:$0xff]
  %v519 = vld [vmem:[%s5 + $0x4b0] sm:$0xff]
  %v520 = vld [vmem:[%s5 + $0x4b8] sm:$0xff]
  %v521 = vld [vmem:[%s5 + $0x4c0] sm:$0xff]
  %v522 = vld [vmem:[%s5 + $0x4c8] sm:$0xff]
  %v523 = vld [vmem:[%s5 + $0x4d0] sm:$0xff]
  %v524 = vld [vmem:[%s5 + $0x4d8] sm:$0xff]
  %v525 = vld [vmem:[%s5 + $0x4e0] sm:$0xff]
  %v526 = vld [vmem:[%s5 + $0x4e8] sm:$0xff]
  %v527 = vld [vmem:[%s5 + $0x4f0] sm:$0xff]
  %v528 = vld [vmem:[%s5 + $0x4f8] sm:$0xff]
  %v529 = vld [vmem:[%s5 + $0x500] sm:$0xff]
  %v530 = vld [vmem:[%s5 + $0x508] sm:$0xff]
  %v531 = vld [vmem:[%s5 + $0x510] sm:$0xff]
  %v532 = vld [vmem:[%s5 + $0x518] sm:$0xff]
  %v533 = vld [vmem:[%s5 + $0x520] sm:$0xff]
  %v534 = vld [vmem:[%s5 + $0x528] sm:$0xff]
  %v535 = vld [vmem:[%s5 + $0x530] sm:$0xff]
  %v536 = vld [vmem:[%s5 + $0x538] sm:$0xff]
  %v537 = vld [vmem:[%s5 + $0x540] sm:$0xff]
  %v538 = vld [vmem:[%s5 + $0x548] sm:$0xff]
  %v539 = vld [vmem:[%s5 + $0x550] sm:$0xff]
  %v540 = vld [vmem:[%s5 + $0x558] sm:$0xff]
  %v541 = vld [vmem:[%s5 + $0x560] sm:$0xff]
  %v542 = vld [vmem:[%s5 + $0x568] sm:$0xff]
  %v543 = vld [vmem:[%s5 + $0x570] sm:$0xff]
  %v544 = vld [vmem:[%s5 + $0x578] sm:$0xff]
  %v545 = vld [vmem:[%s5 + $0x580] sm:$0xff]
  %v546 = vld [vmem:[%s5 + $0x588] sm:$0xff]
  %v547 = vld [vmem:[%s5 + $0x590] sm:$0xff]
  %v548 = vld [vmem:[%s5 + $0x598] sm:$0xff]
  %v549 = vld [vmem:[%s5 + $0x5a0] sm:$0xff]
  %v550 = vld [vmem:[%s5 + $0x5a8] sm:$0xff]
  %v551 = vld [vmem:[%s5 + $0x5b0] sm:$0xff]
  %v552 = vld [vmem:[%s5 + $0x5b8] sm:$0xff]
  %v553 = vld [vmem:[%s5 + $0x5c0] sm:$0xff]
  %v554 = vld [vmem:[%s5 + $0x5c8] sm:$0xff]
  %v555 = vld [vmem:[%s5 + $0x5d0] sm:$0xff]
  %v556 = vld [vmem:[%s5 + $0x5d8] sm:$0xff]
  %v557 = vld [vmem:[%s5 + $0x5e0] sm:$0xff]
  %v558 = vld [vmem:[%s5 + $0x5e8] sm:$0xff]
  %v559 = vld [vmem:[%s5 + $0x5f0] sm:$0xff]
  %v560 = vld [vmem:[%s5 + $0x5f8] sm:$0xff]
  %v561 = vld [vmem:[%s5 + $0x600] sm:$0xff]
  %v562 = vld [vmem:[%s5 + $0x608] sm:$0xff]
  %v563 = vld [vmem:[%s5 + $0x610] sm:$0xff]
  %v564 = vld [vmem:[%s5 + $0x618] sm:$0xff]
  %v565 = vld [vmem:[%s5 + $0x620] sm:$0xff]
  %v566 = vld [vmem:[%s5 + $0x628] sm:$0xff]
  %v567 = vld [vmem:[%s5 + $0x630] sm:$0xff]
  %v568 = vld [vmem:[%s5 + $0x638] sm:$0xff]
  %v569 = vld [vmem:[%s5 + $0x640] sm:$0xff]
  %v570 = vld [vmem:[%s5 + $0x648] sm:$0xff]
  %v571 = vld [vmem:[%s5 + $0x650] sm:$0xff]
  %v572 = vld [vmem:[%s5 + $0x658] sm:$0xff]
  %v573 = vld [vmem:[%s5 + $0x660] sm:$0xff]
  %v574 = vld [vmem:[%s5 + $0x668] sm:$0xff]
  %v575 = vld [vmem:[%s5 + $0x670] sm:$0xff]
  %v576 = vld [vmem:[%s5 + $0x678] sm:$0xff]
  %v577 = vld [vmem:[%s5 + $0x680] sm:$0xff]
  %v578 = vld [vmem:[%s5 + $0x688] sm:$0xff]
  %v579 = vld [vmem:[%s5 + $0x690] sm:$0xff]
  %v580 = vld [vmem:[%s5 + $0x698] sm:$0xff]
  %v581 = vld [vmem:[%s5 + $0x6a0] sm:$0xff]
  %v582 = vld [vmem:[%s5 + $0x6a8] sm:$0xff]
  %v583 = vld [vmem:[%s5 + $0x6b0] sm:$0xff]
  %v584 = vld [vmem:[%s5 + $0x6b8] sm:$0xff]
  %v585 = vld [vmem:[%s5 + $0x6c0] sm:$0xff]
  %v586 = vld [vmem:[%s5 + $0x6c8] sm:$0xff]
  %v587 = vld [vmem:[%s5 + $0x6d0] sm:$0xff]
  %v588 = vld [vmem:[%s5 + $0x6d8] sm:$0xff]
  %v589 = vld [vmem:[%s5 + $0x6e0] sm:$0xff]
  %v590 = vld [vmem:[%s5 + $0x6e8] sm:$0xff]
  %v591 = vld [vmem:[%s5 + $0x6f0] sm:$0xff]
  %v592 = vld [vmem:[%s5 + $0x6f8] sm:$0xff]
  %v593 = vld [vmem:[%s5 + $0x700] sm:$0xff]
  %v594 = vld [vmem:[%s5 + $0x708] sm:$0xff]
  %v595 = vld [vmem:[%s5 + $0x710] sm:$0xff]
  %v596 = vld [vmem:[%s5 + $0x718] sm:$0xff]
  %v597 = vld [vmem:[%s5 + $0x720] sm:$0xff]
  %v598 = vld [vmem:[%s5 + $0x728] sm:$0xff]
  %v599 = vld [vmem:[%s5 + $0x730] sm:$0xff]
  %v600 = vld [vmem:[%s5 + $0x738] sm:$0xff]
  %v601 = vld [vmem:[%s5 + $0x740] sm:$0xff]
  %v602 = vld [vmem:[%s5 + $0x748] sm:$0xff]
  %v603 = vld [vmem:[%s5 + $0x750] sm:$0xff]
  %v604 = vld [vmem:[%s5 + $0x758] sm:$0xff]
  %v605 = vld [vmem:[%s5 + $0x760] sm:$0xff]
  %v606 = vld [vmem:[%s5 + $0x768] sm:$0xff]
  %v607 = vld [vmem:[%s5 + $0x770] sm:$0xff]
  %v608 = vld [vmem:[%s5 + $0x778] sm:$0xff]
  %v609 = vld [vmem:[%s5 + $0x780] sm:$0xff]
  %v610 = vld [vmem:[%s5 + $0x788] sm:$0xff]
  %v611 = vld [vmem:[%s5 + $0x790] sm:$0xff]
  %v612 = vld [vmem:[%s5 + $0x798] sm:$0xff]
  %v613 = vld [vmem:[%s5 + $0x7a0] sm:$0xff]
  %v614 = vld [vmem:[%s5 + $0x7a8] sm:$0xff]
  %v615 = vld [vmem:[%s5 + $0x7b0] sm:$0xff]
  %v616 = vld [vmem:[%s5 + $0x7b8] sm:$0xff]
  %v617 = vld [vmem:[%s5 + $0x7c0] sm:$0xff]
  %v618 = vld [vmem:[%s5 + $0x7c8] sm:$0xff]
  %v619 = vld [vmem:[%s5 + $0x7d0] sm:$0xff]
  %v620 = vld [vmem:[%s5 + $0x7d8] sm:$0xff]
  %v621 = vld [vmem:[%s5 + $0x7e0] sm:$0xff]
  %v622 = vld [vmem:[%s5 + $0x7e8] sm:$0xff]
  %v623 = vld [vmem:[%s5 + $0x7f0] sm:$0xff]
  %v624 = vld [vmem:[%s5 + $0x7f8] sm:$0xff]
  %v625 = vld [vmem:[%s5 + $0x800] sm:$0xff]
  %v626 = vld [vmem:[%s5 + $0x808] sm:$0xff]
  %v627 = vld [vmem:[%s5 + $0x810] sm:$0xff]
  %v628 = vld [vmem:[%s5 + $0x818] sm:$0xff]
  %v629 = vld [vmem:[%s5 + $0x820] sm:$0xff]
  %v630 = vld [vmem:[%s5 + $0x828] sm:$0xff]
  %v631 = vld [vmem:[%s5 + $0x830] sm:$0xff]
  %v632 = vld [vmem:[%s5 + $0x838] sm:$0xff]
  %v633 = vld [vmem:[%s5 + $0x840] sm:$0xff]
  %v634 = vld [vmem:[%s5 + $0x848] sm:$0xff]
  %v635 = vld [vmem:[%s5 + $0x850] sm:$0xff]
  %v636 = vld [vmem:[%s5 + $0x858] sm:$0xff]
  %v637 = vld [vmem:[%s5 + $0x860] sm:$0xff]
  %v638 = vld [vmem:[%s5 + $0x868] sm:$0xff]
  %v639 = vld [vmem:[%s5 + $0x870] sm:$0xff]
  %v640 = vld [vmem:[%s5 + $0x878] sm:$0xff]
  %v641 = vld [vmem:[%s5 + $0x880] sm:$0xff]
  %v642 = vld [vmem:[%s5 + $0x888] sm:$0xff]
  %v643 = vld [vmem:[%s5 + $0x890] sm:$0xff]
  %v644 = vld [vmem:[%s5 + $0x898] sm:$0xff]
  %v645 = vld [vmem:[%s5 + $0x8a0] sm:$0xff]
  %v646 = vld [vmem:[%s5 + $0x8a8] sm:$0xff]
  %v647 = vld [vmem:[%s5 + $0x8b0] sm:$0xff]
  %v648 = vld [vmem:[%s5 + $0x8b8] sm:$0xff]
  %v649 = vld [vmem:[%s5 + $0x8c0] sm:$0xff]
  %v650 = vld [vmem:[%s5 + $0x8c8] sm:$0xff]
  %v651 = vld [vmem:[%s5 + $0x8d0] sm:$0xff]
  %v652 = vld [vmem:[%s5 + $0x8d8] sm:$0xff]
  %v653 = vld [vmem:[%s5 + $0x8e0] sm:$0xff]
  %v654 = vld [vmem:[%s5 + $0x8e8] sm:$0xff]
  %v655 = vld [vmem:[%s5 + $0x8f0] sm:$0xff]
  %v656 = vld [vmem:[%s5 + $0x8f8] sm:$0xff]
  %v660 = vrot.slane %v355, 2
  %v661 = vrot.slane %v356, 2
  %v662 = vrot.slane %v357, 2
  %663 = vrot.lane.b32.xlu0 %v660, 123
  %v664 = vpop.permute.xlu0 %663
  %665 = vrot.lane.b32.xlu0 %v661, 123
  %v666 = vpop.permute.xlu0 %665
  %667 = vrot.lane.b32.xlu0 %v662, 123
  %v668 = vpop.permute.xlu0 %667
  %vm669 = vcmask 1006592
  %v670 = vsel %vm669, %v664, %v666
  %v671 = vsel %vm669, %v666, %v668
  %674 = vmatpush.msra.mxu0 %v504
  %675 = vmatpush.msra.mxu0 %v495
  %676 = vmatpush.msra.mxu0 %v486
  %677 = vmatpush.msra.mxu0 %v477
  %678 = vmatpush.msra.mxu0 %v468
  %679 = vmatpush.msra.mxu0 %v459
  %680 = vmatpush.msra.mxu0 %v450
  %681 = vmatpush.msra.mxu0 %v441
  %682 = vmatpush.msra.mxu0 %v432
  %683 = vmatpush.msra.mxu0 %v423
  %684 = vmatpush.msra.mxu0 %v414
  %685 = vmatpush.msra.mxu0 %v405
  %686 = vmatpush.msra.mxu0 %v396
  %687 = vmatpush.msra.mxu0 %v387
  %688 = vmatpush.msra.mxu0 %v378
  %689 = vmatpush.msra.mxu0 %v369
  %690 = vmatmul.f32.gmra.mxu0 %v670
  %v691 = vpop.f32.mrf.mxu0
  %v692 = vadd.f32 0.0, %v691
  %693 = vdwg.mxu0
  %694 = vmatpush.msra.mxu0 %v648
  %695 = vmatpush.msra.mxu0 %v639
  %696 = vmatpush.msra.mxu0 %v630
  %697 = vmatpush.msra.mxu0 %v621
  %698 = vmatpush.msra.mxu0 %v612
  %699 = vmatpush.msra.mxu0 %v603
  %700 = vmatpush.msra.mxu0 %v594
  %701 = vmatpush.msra.mxu0 %v585
  %702 = vmatpush.msra.mxu0 %v576
  %703 = vmatpush.msra.mxu0 %v567
  %704 = vmatpush.msra.mxu0 %v558
  %705 = vmatpush.msra.mxu0 %v549
  %706 = vmatpush.msra.mxu0 %v540
  %707 = vmatpush.msra.mxu0 %v531
  %708 = vmatpush.msra.mxu0 %v522
  %709 = vmatpush.msra.mxu0 %v513
  %710 = vmatmul.f32.gmra.mxu0 %v671
  %v711 = vpop.f32.mrf.mxu0
  %v712 = vadd.f32 %v692, %v711
  %713 = vdwg.mxu0
  %714 = vmatpush.msra.mxu0 %v505
  %715 = vmatpush.msra.mxu0 %v496
  %716 = vmatpush.msra.mxu0 %v487
  %717 = vmatpush.msra.mxu0 %v478
  %718 = vmatpush.msra.mxu0 %v469
  %719 = vmatpush.msra.mxu0 %v460
  %720 = vmatpush.msra.mxu0 %v451
  %721 = vmatpush.msra.mxu0 %v442
  %722 = vmatpush.msra.mxu0 %v433
  %723 = vmatpush.msra.mxu0 %v424
  %724 = vmatpush.msra.mxu0 %v415
  %725 = vmatpush.msra.mxu0 %v406
  %726 = vmatpush.msra.mxu0 %v397
  %727 = vmatpush.msra.mxu0 %v388
  %728 = vmatpush.msra.mxu0 %v379
  %729 = vmatpush.msra.mxu0 %v370
  %730 = vmatmul.f32.gmra.mxu0 %v670
  %v731 = vpop.f32.mrf.mxu0
  %v732 = vadd.f32 0.0, %v731
  %733 = vdwg.mxu0
  %734 = vmatpush.msra.mxu0 %v649
  %735 = vmatpush.msra.mxu0 %v640
  %736 = vmatpush.msra.mxu0 %v631
  %737 = vmatpush.msra.mxu0 %v622
  %738 = vmatpush.msra.mxu0 %v613
  %739 = vmatpush.msra.mxu0 %v604
  %740 = vmatpush.msra.mxu0 %v595
  %741 = vmatpush.msra.mxu0 %v586
  %742 = vmatpush.msra.mxu0 %v577
  %743 = vmatpush.msra.mxu0 %v568
  %744 = vmatpush.msra.mxu0 %v559
  %745 = vmatpush.msra.mxu0 %v550
  %746 = vmatpush.msra.mxu0 %v541
  %747 = vmatpush.msra.mxu0 %v532
  %748 = vmatpush.msra.mxu0 %v523
  %749 = vmatpush.msra.mxu0 %v514
  %750 = vmatmul.f32.gmra.mxu0 %v671
  %v751 = vpop.f32.mrf.mxu0
  %v752 = vadd.f32 %v732, %v751
  %753 = vdwg.mxu0
  %754 = vmatpush.msra.mxu0 %v506
  %755 = vmatpush.msra.mxu0 %v497
  %756 = vmatpush.msra.mxu0 %v488
  %757 = vmatpush.msra.mxu0 %v479
  %758 = vmatpush.msra.mxu0 %v470
  %759 = vmatpush.msra.mxu0 %v461
  %760 = vmatpush.msra.mxu0 %v452
  %761 = vmatpush.msra.mxu0 %v443
  %762 = vmatpush.msra.mxu0 %v434
  %763 = vmatpush.msra.mxu0 %v425
  %764 = vmatpush.msra.mxu0 %v416
  %765 = vmatpush.msra.mxu0 %v407
  %766 = vmatpush.msra.mxu0 %v398
  %767 = vmatpush.msra.mxu0 %v389
  %768 = vmatpush.msra.mxu0 %v380
  %769 = vmatpush.msra.mxu0 %v371
  %770 = vmatmul.f32.gmra.mxu0 %v670
  %v771 = vpop.f32.mrf.mxu0
  %v772 = vadd.f32 0.0, %v771
  %773 = vdwg.mxu0
  %774 = vmatpush.msra.mxu0 %v650
  %775 = vmatpush.msra.mxu0 %v641
  %776 = vmatpush.msra.mxu0 %v632
  %777 = vmatpush.msra.mxu0 %v623
  %778 = vmatpush.msra.mxu0 %v614
  %779 = vmatpush.msra.mxu0 %v605
  %780 = vmatpush.msra.mxu0 %v596
  %781 = vmatpush.msra.mxu0 %v587
  %782 = vmatpush.msra.mxu0 %v578
  %783 = vmatpush.msra.mxu0 %v569
  %784 = vmatpush.msra.mxu0 %v560
  %785 = vmatpush.msra.mxu0 %v551
  %786 = vmatpush.msra.mxu0 %v542
  %787 = vmatpush.msra.mxu0 %v533
  %788 = vmatpush.msra.mxu0 %v524
  %789 = vmatpush.msra.mxu0 %v515
  %790 = vmatmul.f32.gmra.mxu0 %v671
  %v791 = vpop.f32.mrf.mxu0
  %v792 = vadd.f32 %v772, %v791
  %793 = vdwg.mxu0
  %794 = vmatpush.msra.mxu0 %v507
  %795 = vmatpush.msra.mxu0 %v498
  %796 = vmatpush.msra.mxu0 %v489
  %797 = vmatpush.msra.mxu0 %v480
  %798 = vmatpush.msra.mxu0 %v471
  %799 = vmatpush.msra.mxu0 %v462
  %800 = vmatpush.msra.mxu0 %v453
  %801 = vmatpush.msra.mxu0 %v444
  %802 = vmatpush.msra.mxu0 %v435
  %803 = vmatpush.msra.mxu0 %v426
  %804 = vmatpush.msra.mxu0 %v417
  %805 = vmatpush.msra.mxu0 %v408
  %806 = vmatpush.msra.mxu0 %v399
  %807 = vmatpush.msra.mxu0 %v390
  %808 = vmatpush.msra.mxu0 %v381
  %809 = vmatpush.msra.mxu0 %v372
  %810 = vmatmul.f32.gmra.mxu0 %v670
  %v811 = vpop.f32.mrf.mxu0
  %v812 = vadd.f32 0.0, %v811
  %813 = vdwg.mxu0
  %814 = vmatpush.msra.mxu0 %v651
  %815 = vmatpush.msra.mxu0 %v642
  %816 = vmatpush.msra.mxu0 %v633
  %817 = vmatpush.msra.mxu0 %v624
  %818 = vmatpush.msra.mxu0 %v615
  %819 = vmatpush.msra.mxu0 %v606
  %820 = vmatpush.msra.mxu0 %v597
  %821 = vmatpush.msra.mxu0 %v588
  %822 = vmatpush.msra.mxu0 %v579
  %823 = vmatpush.msra.mxu0 %v570
  %824 = vmatpush.msra.mxu0 %v561
  %825 = vmatpush.msra.mxu0 %v552
  %826 = vmatpush.msra.mxu0 %v543
  %827 = vmatpush.msra.mxu0 %v534
  %828 = vmatpush.msra.mxu0 %v525
  %829 = vmatpush.msra.mxu0 %v516
  %830 = vmatmul.f32.gmra.mxu0 %v671
  %v831 = vpop.f32.mrf.mxu0
  %v832 = vadd.f32 %v812, %v831
  %833 = vdwg.mxu0
  %834 = vmatpush.msra.mxu0 %v508
  %835 = vmatpush.msra.mxu0 %v499
  %836 = vmatpush.msra.mxu0 %v490
  %837 = vmatpush.msra.mxu0 %v481
  %838 = vmatpush.msra.mxu0 %v472
  %839 = vmatpush.msra.mxu0 %v463
  %840 = vmatpush.msra.mxu0 %v454
  %841 = vmatpush.msra.mxu0 %v445
  %842 = vmatpush.msra.mxu0 %v436
  %843 = vmatpush.msra.mxu0 %v427
  %844 = vmatpush.msra.mxu0 %v418
  %845 = vmatpush.msra.mxu0 %v409
  %846 = vmatpush.msra.mxu0 %v400
  %847 = vmatpush.msra.mxu0 %v391
  %848 = vmatpush.msra.mxu0 %v382
  %849 = vmatpush.msra.mxu0 %v373
  %850 = vmatmul.f32.gmra.mxu0 %v670
  %v851 = vpop.f32.mrf.mxu0
  %v852 = vadd.f32 0.0, %v851
  %853 = vdwg.mxu0
  %854 = vmatpush.msra.mxu0 %v652
  %855 = vmatpush.msra.mxu0 %v643
  %856 = vmatpush.msra.mxu0 %v634
  %857 = vmatpush.msra.mxu0 %v625
  %858 = vmatpush.msra.mxu0 %v616
  %859 = vmatpush.msra.mxu0 %v607
  %860 = vmatpush.msra.mxu0 %v598
  %861 = vmatpush.msra.mxu0 %v589
  %862 = vmatpush.msra.mxu0 %v580
  %863 = vmatpush.msra.mxu0 %v571
  %864 = vmatpush.msra.mxu0 %v562
  %865 = vmatpush.msra.mxu0 %v553
  %866 = vmatpush.msra.mxu0 %v544
  %867 = vmatpush.msra.mxu0 %v535
  %868 = vmatpush.msra.mxu0 %v526
  %869 = vmatpush.msra.mxu0 %v517
  %870 = vmatmul.f32.gmra.mxu0 %v671
  %v871 = vpop.f32.mrf.mxu0
  %v872 = vadd.f32 %v852, %v871
  %873 = vdwg.mxu0
  %874 = vmatpush.msra.mxu0 %v509
  %875 = vmatpush.msra.mxu0 %v500
  %876 = vmatpush.msra.mxu0 %v491
  %877 = vmatpush.msra.mxu0 %v482
  %878 = vmatpush.msra.mxu0 %v473
  %879 = vmatpush.msra.mxu0 %v464
  %880 = vmatpush.msra.mxu0 %v455
  %881 = vmatpush.msra.mxu0 %v446
  %882 = vmatpush.msra.mxu0 %v437
  %883 = vmatpush.msra.mxu0 %v428
  %884 = vmatpush.msra.mxu0 %v419
  %885 = vmatpush.msra.mxu0 %v410
  %886 = vmatpush.msra.mxu0 %v401
  %887 = vmatpush.msra.mxu0 %v392
  %888 = vmatpush.msra.mxu0 %v383
  %889 = vmatpush.msra.mxu0 %v374
  %890 = vmatmul.f32.gmra.mxu0 %v670
  %v891 = vpop.f32.mrf.mxu0
  %v892 = vadd.f32 0.0, %v891
  %893 = vdwg.mxu0
  %894 = vmatpush.msra.mxu0 %v653
  %895 = vmatpush.msra.mxu0 %v644
  %896 = vmatpush.msra.mxu0 %v635
  %897 = vmatpush.msra.mxu0 %v626
  %898 = vmatpush.msra.mxu0 %v617
  %899 = vmatpush.msra.mxu0 %v608
  %900 = vmatpush.msra.mxu0 %v599
  %901 = vmatpush.msra.mxu0 %v590
  %902 = vmatpush.msra.mxu0 %v581
  %903 = vmatpush.msra.mxu0 %v572
  %904 = vmatpush.msra.mxu0 %v563
  %905 = vmatpush.msra.mxu0 %v554
  %906 = vmatpush.msra.mxu0 %v545
  %907 = vmatpush.msra.mxu0 %v536
  %908 = vmatpush.msra.mxu0 %v527
  %909 = vmatpush.msra.mxu0 %v518
  %910 = vmatmul.f32.gmra.mxu0 %v671
  %v911 = vpop.f32.mrf.mxu0
  %v912 = vadd.f32 %v892, %v911
  %913 = vdwg.mxu0
  %914 = vmatpush.msra.mxu0 %v510
  %915 = vmatpush.msra.mxu0 %v501
  %916 = vmatpush.msra.mxu0 %v492
  %917 = vmatpush.msra.mxu0 %v483
  %918 = vmatpush.msra.mxu0 %v474
  %919 = vmatpush.msra.mxu0 %v465
  %920 = vmatpush.msra.mxu0 %v456
  %921 = vmatpush.msra.mxu0 %v447
  %922 = vmatpush.msra.mxu0 %v438
  %923 = vmatpush.msra.mxu0 %v429
  %924 = vmatpush.msra.mxu0 %v420
  %925 = vmatpush.msra.mxu0 %v411
  %926 = vmatpush.msra.mxu0 %v402
  %927 = vmatpush.msra.mxu0 %v393
  %928 = vmatpush.msra.mxu0 %v384
  %929 = vmatpush.msra.mxu0 %v375
  %930 = vmatmul.f32.gmra.mxu0 %v670
  %v931 = vpop.f32.mrf.mxu0
  %v932 = vadd.f32 0.0, %v931
  %933 = vdwg.mxu0
  %934 = vmatpush.msra.mxu0 %v654
  %935 = vmatpush.msra.mxu0 %v645
  %936 = vmatpush.msra.mxu0 %v636
  %937 = vmatpush.msra.mxu0 %v627
  %938 = vmatpush.msra.mxu0 %v618
  %939 = vmatpush.msra.mxu0 %v609
  %940 = vmatpush.msra.mxu0 %v600
  %941 = vmatpush.msra.mxu0 %v591
  %942 = vmatpush.msra.mxu0 %v582
  %943 = vmatpush.msra.mxu0 %v573
  %944 = vmatpush.msra.mxu0 %v564
  %945 = vmatpush.msra.mxu0 %v555
  %946 = vmatpush.msra.mxu0 %v546
  %947 = vmatpush.msra.mxu0 %v537
  %948 = vmatpush.msra.mxu0 %v528
  %949 = vmatpush.msra.mxu0 %v519
  %950 = vmatmul.f32.gmra.mxu0 %v671
  %v951 = vpop.f32.mrf.mxu0
  %v952 = vadd.f32 %v932, %v951
  %953 = vdwg.mxu0
  %954 = vmatpush.msra.mxu0 %v511
  %955 = vmatpush.msra.mxu0 %v502
  %956 = vmatpush.msra.mxu0 %v493
  %957 = vmatpush.msra.mxu0 %v484
  %958 = vmatpush.msra.mxu0 %v475
  %959 = vmatpush.msra.mxu0 %v466
  %960 = vmatpush.msra.mxu0 %v457
  %961 = vmatpush.msra.mxu0 %v448
  %962 = vmatpush.msra.mxu0 %v439
  %963 = vmatpush.msra.mxu0 %v430
  %964 = vmatpush.msra.mxu0 %v421
  %965 = vmatpush.msra.mxu0 %v412
  %966 = vmatpush.msra.mxu0 %v403
  %967 = vmatpush.msra.mxu0 %v394
  %968 = vmatpush.msra.mxu0 %v385
  %969 = vmatpush.msra.mxu0 %v376
  %970 = vmatmul.f32.gmra.mxu0 %v670
  %v971 = vpop.f32.mrf.mxu0
  %v972 = vadd.f32 0.0, %v971
  %973 = vdwg.mxu0
  %974 = vmatpush.msra.mxu0 %v655
  %975 = vmatpush.msra.mxu0 %v646
  %976 = vmatpush.msra.mxu0 %v637
  %977 = vmatpush.msra.mxu0 %v628
  %978 = vmatpush.msra.mxu0 %v619
  %979 = vmatpush.msra.mxu0 %v610
  %980 = vmatpush.msra.mxu0 %v601
  %981 = vmatpush.msra.mxu0 %v592
  %982 = vmatpush.msra.mxu0 %v583
  %983 = vmatpush.msra.mxu0 %v574
  %984 = vmatpush.msra.mxu0 %v565
  %985 = vmatpush.msra.mxu0 %v556
  %986 = vmatpush.msra.mxu0 %v547
  %987 = vmatpush.msra.mxu0 %v538
  %988 = vmatpush.msra.mxu0 %v529
  %989 = vmatpush.msra.mxu0 %v520
  %990 = vmatmul.f32.gmra.mxu0 %v671
  %v991 = vpop.f32.mrf.mxu0
  %v992 = vadd.f32 %v972, %v991
  %993 = vdwg.mxu0
  %994 = vmatpush.msra.mxu0 %v512
  %995 = vmatpush.msra.mxu0 %v503
  %996 = vmatpush.msra.mxu0 %v494
  %997 = vmatpush.msra.mxu0 %v485
  %998 = vmatpush.msra.mxu0 %v476
  %999 = vmatpush.msra.mxu0 %v467
  %1000 = vmatpush.msra.mxu0 %v458
  %1001 = vmatpush.msra.mxu0 %v449
  %1002 = vmatpush.msra.mxu0 %v440
  %1003 = vmatpush.msra.mxu0 %v431
  %1004 = vmatpush.msra.mxu0 %v422
  %1005 = vmatpush.msra.mxu0 %v413
  %1006 = vmatpush.msra.mxu0 %v404
  %1007 = vmatpush.msra.mxu0 %v395
  %1008 = vmatpush.msra.mxu0 %v386
  %1009 = vmatpush.msra.mxu0 %v377
  %1010 = vmatmul.f32.gmra.mxu0 %v670
  %v1011 = vpop.f32.mrf.mxu0
  %v1012 = vadd.f32 0.0, %v1011
  %1013 = vdwg.mxu0
  %1014 = vmatpush.msra.mxu0 %v656
  %1015 = vmatpush.msra.mxu0 %v647
  %1016 = vmatpush.msra.mxu0 %v638
  %1017 = vmatpush.msra.mxu0 %v629
  %1018 = vmatpush.msra.mxu0 %v620
  %1019 = vmatpush.msra.mxu0 %v611
  %1020 = vmatpush.msra.mxu0 %v602
  %1021 = vmatpush.msra.mxu0 %v593
  %1022 = vmatpush.msra.mxu0 %v584
  %1023 = vmatpush.msra.mxu0 %v575
  %1024 = vmatpush.msra.mxu0 %v566
  %1025 = vmatpush.msra.mxu0 %v557
  %1026 = vmatpush.msra.mxu0 %v548
  %1027 = vmatpush.msra.mxu0 %v539
  %1028 = vmatpush.msra.mxu0 %v530
  %1029 = vmatpush.msra.mxu0 %v521
  %1030 = vmatmul.f32.gmra.mxu0 %v671
  %v1031 = vpop.f32.mrf.mxu0
  %v1032 = vadd.f32 %v1012, %v1031
  %1033 = vdwg.mxu0
  %v1034 = vld [vmem:[%s7] sm:$0xff]
  %v1035 = vld [vmem:[%s7 + $0x8] sm:$0x1]
  %v1036 = vld [vmem:[%s6] sm:$0x1]
  %v1038 = vrot.slane %v752, 7
  %v1041 = vrot.slane %v792, 6
  %v1044 = vrot.slane %v832, 5
  %v1047 = vrot.slane %v872, 4
  %v1050 = vrot.slane %v912, 3
  %v1053 = vrot.slane %v952, 2
  %v1056 = vrot.slane %v992, 1
  %vm1058 = vcmask 1040384
  %v1059 = vsel %vm1058, %v712, %v1038
  %v1060 = vsel %vm263, %v1059, %v1041
  %vm1061 = vcmask 1042432
  %v1062 = vsel %vm1061, %v1060, %v1044
  %v1063 = vsel %vm127, %v1062, %v1047
  %vm1064 = vcmask 1044480
  %v1065 = vsel %vm1064, %v1063, %v1050
  %vm1066 = vcmask 1045504
  %v1067 = vsel %vm1066, %v1065, %v1053
  %vm1068 = vcmask 1046528
  %v1069 = vsel %vm1068, %v1067, %v1056
  %v1071 = vperm.slane %v1036, 0
  %vm1073 = vcmask 72704
  %v1075 = vsel %vm1073, %v1034, 0
  %v1078 = vsel %vm1073, %v1035, 0
  %v1081 = vsel %vm1058, %v1032, 0
  %1083 = vmatpush.msra.mxu0 0.0
  %1084 = vmatpush.msra.mxu0 0.0
  %1085 = vmatpush.msra.mxu0 0.0
  %1086 = vmatpush.msra.mxu0 0.0
  %1087 = vmatpush.msra.mxu0 0.0
  %1088 = vmatpush.msra.mxu0 0.0
  %1089 = vmatpush.msra.mxu0 0.0
  %1090 = vmatpush.msra.mxu0 0.0
  %1091 = vmatpush.msra.mxu0 0.0
  %1092 = vmatpush.msra.mxu0 0.0
  %1093 = vmatpush.msra.mxu0 0.0
  %1094 = vmatpush.msra.mxu0 0.0
  %1095 = vmatpush.msra.mxu0 0.0
  %1096 = vmatpush.msra.mxu0 0.0
  %1097 = vmatpush.msra.mxu0 %v1081
  %1098 = vmatpush.msra.mxu0 %v1069
  %1099 = vmatmul.f32.gmra.mxu0 %v1075
  %v1100 = vpop.f32.mrf.mxu0
  %v1101 = vadd.f32 %v1071, %v1100
  %1102 = vmatmul.f32.gmra.mxu0 %v1078
  %v1103 = vpop.f32.mrf.mxu0
  %v1104 = vadd.f32 %v1071, %v1103
  %1105 = vdwg.mxu0
  %v1107 = vrot.slane %v712, 1
  %v1109 = vrot.slane %v792, 7
  %v1111 = vrot.slane %v832, 6
  %v1113 = vrot.slane %v872, 5
  %v1115 = vrot.slane %v912, 4
  %v1117 = vrot.slane %v952, 3
  %v1119 = vrot.slane %v992, 2
  %v1121 = vrot.slane %v1032, 1
  %v1122 = vsel %vm1058, %v1107, %v752
  %v1123 = vsel %vm263, %v1122, %v1109
  %v1124 = vsel %vm1061, %v1123, %v1111
  %v1125 = vsel %vm127, %v1124, %v1113
  %v1126 = vsel %vm1064, %v1125, %v1115
  %v1127 = vsel %vm1066, %v1126, %v1117
  %v1128 = vsel %vm1068, %v1127, %v1119
  %v1129 = vsel %vm1058, %v1121, 0
  %1131 = vmatpush.msra.mxu0 0.0
  %1132 = vmatpush.msra.mxu0 0.0
  %1133 = vmatpush.msra.mxu0 0.0
  %1134 = vmatpush.msra.mxu0 0.0
  %1135 = vmatpush.msra.mxu0 0.0
  %1136 = vmatpush.msra.mxu0 0.0
  %1137 = vmatpush.msra.mxu0 0.0
  %1138 = vmatpush.msra.mxu0 0.0
  %1139 = vmatpush.msra.mxu0 0.0
  %1140 = vmatpush.msra.mxu0 0.0
  %1141 = vmatpush.msra.mxu0 0.0
  %1142 = vmatpush.msra.mxu0 0.0
  %1143 = vmatpush.msra.mxu0 0.0
  %1144 = vmatpush.msra.mxu0 0.0
  %1145 = vmatpush.msra.mxu0 %v1129
  %1146 = vmatpush.msra.mxu0 %v1128
  %1147 = vmatmul.f32.gmra.mxu0 %v1075
  %v1148 = vpop.f32.mrf.mxu0
  %v1149 = vadd.f32 %v1071, %v1148
  %1150 = vmatmul.f32.gmra.mxu0 %v1078
  %v1151 = vpop.f32.mrf.mxu0
  %v1152 = vadd.f32 %v1071, %v1151
  %1153 = vdwg.mxu0
  %v1156 = vrot.slane %v1149, 7
  %v1157 = vrot.slane %v1152, 7
  %v1158 = vsel %vm1058, %v1156, %v1157
  %v1161 = vsel %vm1058, %v1104, %v1156
  %vm1162 = vcmp.ge.f32.partialorder %v1101, 0.0
  %vm1163 = vcmp.ge.f32.partialorder %v1161, 0.0
  %vm1164 = vcmp.ge.f32.partialorder %v1158, 0.0
  %v1165 = vmul.f32 %v1101, 0.01
  %v1166 = vmul.f32 %v1161, 0.01
  %v1167 = vmul.f32 %v1158, 0.01
  %v1168 = vsel %vm1162, %v1101, %v1165
  %v1169 = vsel %vm1163, %v1161, %v1166
  %v1170 = vsel %vm1164, %v1158, %v1167
  %v1171 = vld [vmem:[%s8] sm:$0xff]
  %v1172 = vld [vmem:[%s8 + $0x8] sm:$0xff]
  %v1173 = vld [vmem:[%s8 + $0x10] sm:$0xff]
  %v1174 = vld [vmem:[%s8 + $0x18] sm:$0xff]
  %v1175 = vld [vmem:[%s8 + $0x20] sm:$0xff]
  %v1176 = vld [vmem:[%s8 + $0x28] sm:$0xff]
  %v1177 = vld [vmem:[%s8 + $0x30] sm:$0xff]
  %v1178 = vld [vmem:[%s8 + $0x38] sm:$0xff]
  %v1179 = vld [vmem:[%s8 + $0x40] sm:$0xff]
  %v1180 = vld [vmem:[%s8 + $0x48] sm:$0xff]
  %v1181 = vld [vmem:[%s8 + $0x50] sm:$0xff]
  %v1182 = vld [vmem:[%s8 + $0x58] sm:$0xff]
  %v1183 = vld [vmem:[%s8 + $0x60] sm:$0xff]
  %v1184 = vld [vmem:[%s8 + $0x68] sm:$0xff]
  %v1185 = vld [vmem:[%s8 + $0x70] sm:$0xff]
  %v1186 = vld [vmem:[%s8 + $0x78] sm:$0xff]
  %v1187 = vld [vmem:[%s8 + $0x80] sm:$0xff]
  %v1188 = vld [vmem:[%s8 + $0x88] sm:$0xff]
  %v1189 = vld [vmem:[%s8 + $0x90] sm:$0xff]
  %v1190 = vld [vmem:[%s8 + $0x98] sm:$0xff]
  %v1191 = vld [vmem:[%s8 + $0xa0] sm:$0xff]
  %v1192 = vld [vmem:[%s8 + $0xa8] sm:$0xff]
  %v1193 = vld [vmem:[%s8 + $0xb0] sm:$0xff]
  %v1194 = vld [vmem:[%s8 + $0xb8] sm:$0xff]
  %v1195 = vld [vmem:[%s8 + $0xc0] sm:$0xff]
  %v1196 = vld [vmem:[%s8 + $0xc8] sm:$0xff]
  %v1197 = vld [vmem:[%s8 + $0xd0] sm:$0xff]
  %v1198 = vld [vmem:[%s8 + $0xd8] sm:$0xff]
  %v1199 = vld [vmem:[%s8 + $0xe0] sm:$0xff]
  %v1200 = vld [vmem:[%s8 + $0xe8] sm:$0xff]
  %v1201 = vld [vmem:[%s8 + $0xf0] sm:$0xff]
  %v1202 = vld [vmem:[%s8 + $0xf8] sm:$0xff]
  %v1203 = vld [vmem:[%s8 + $0x100] sm:$0xff]
  %v1204 = vld [vmem:[%s8 + $0x108] sm:$0xff]
  %v1205 = vld [vmem:[%s8 + $0x110] sm:$0xff]
  %v1206 = vld [vmem:[%s8 + $0x118] sm:$0xff]
  %v1207 = vld [vmem:[%s8 + $0x120] sm:$0xff]
  %v1208 = vld [vmem:[%s8 + $0x128] sm:$0xff]
  %v1209 = vld [vmem:[%s8 + $0x130] sm:$0xff]
  %v1210 = vld [vmem:[%s8 + $0x138] sm:$0xff]
  %v1211 = vld [vmem:[%s8 + $0x140] sm:$0xff]
  %v1212 = vld [vmem:[%s8 + $0x148] sm:$0xff]
  %v1213 = vld [vmem:[%s8 + $0x150] sm:$0xff]
  %v1214 = vld [vmem:[%s8 + $0x158] sm:$0xff]
  %v1215 = vld [vmem:[%s8 + $0x160] sm:$0xff]
  %v1216 = vld [vmem:[%s8 + $0x168] sm:$0xff]
  %v1217 = vld [vmem:[%s8 + $0x170] sm:$0xff]
  %v1218 = vld [vmem:[%s8 + $0x178] sm:$0xff]
  %v1219 = vld [vmem:[%s8 + $0x180] sm:$0xff]
  %v1220 = vld [vmem:[%s8 + $0x188] sm:$0xff]
  %v1221 = vld [vmem:[%s8 + $0x190] sm:$0xff]
  %v1222 = vld [vmem:[%s8 + $0x198] sm:$0xff]
  %v1223 = vld [vmem:[%s8 + $0x1a0] sm:$0xff]
  %v1224 = vld [vmem:[%s8 + $0x1a8] sm:$0xff]
  %v1225 = vld [vmem:[%s8 + $0x1b0] sm:$0xff]
  %v1226 = vld [vmem:[%s8 + $0x1b8] sm:$0xff]
  %v1227 = vld [vmem:[%s8 + $0x1c0] sm:$0xff]
  %v1228 = vld [vmem:[%s8 + $0x1c8] sm:$0xff]
  %v1229 = vld [vmem:[%s8 + $0x1d0] sm:$0xff]
  %v1230 = vld [vmem:[%s8 + $0x1d8] sm:$0xff]
  %v1231 = vld [vmem:[%s8 + $0x1e0] sm:$0xff]
  %v1232 = vld [vmem:[%s8 + $0x1e8] sm:$0xff]
  %v1233 = vld [vmem:[%s8 + $0x1f0] sm:$0xff]
  %v1234 = vld [vmem:[%s8 + $0x1f8] sm:$0xff]
  %v1235 = vld [vmem:[%s8 + $0x200] sm:$0xff]
  %v1236 = vld [vmem:[%s8 + $0x208] sm:$0xff]
  %v1237 = vld [vmem:[%s8 + $0x210] sm:$0xff]
  %v1238 = vld [vmem:[%s8 + $0x218] sm:$0xff]
  %v1239 = vld [vmem:[%s8 + $0x220] sm:$0xff]
  %v1240 = vld [vmem:[%s8 + $0x228] sm:$0xff]
  %v1241 = vld [vmem:[%s8 + $0x230] sm:$0xff]
  %v1242 = vld [vmem:[%s8 + $0x238] sm:$0xff]
  %v1243 = vld [vmem:[%s8 + $0x240] sm:$0xff]
  %v1244 = vld [vmem:[%s8 + $0x248] sm:$0xff]
  %v1245 = vld [vmem:[%s8 + $0x250] sm:$0xff]
  %v1246 = vld [vmem:[%s8 + $0x258] sm:$0xff]
  %v1247 = vld [vmem:[%s8 + $0x260] sm:$0xff]
  %v1248 = vld [vmem:[%s8 + $0x268] sm:$0xff]
  %v1249 = vld [vmem:[%s8 + $0x270] sm:$0xff]
  %v1250 = vld [vmem:[%s8 + $0x278] sm:$0xff]
  %1251 = vmatpush.msra.mxu0 %v1246
  %1252 = vmatpush.msra.mxu0 %v1241
  %1253 = vmatpush.msra.mxu0 %v1236
  %1254 = vmatpush.msra.mxu0 %v1231
  %1255 = vmatpush.msra.mxu0 %v1226
  %1256 = vmatpush.msra.mxu0 %v1221
  %1257 = vmatpush.msra.mxu0 %v1216
  %1258 = vmatpush.msra.mxu0 %v1211
  %1259 = vmatpush.msra.mxu0 %v1206
  %1260 = vmatpush.msra.mxu0 %v1201
  %1261 = vmatpush.msra.mxu0 %v1196
  %1262 = vmatpush.msra.mxu0 %v1191
  %1263 = vmatpush.msra.mxu0 %v1186
  %1264 = vmatpush.msra.mxu0 %v1181
  %1265 = vmatpush.msra.mxu0 %v1176
  %1266 = vmatpush.msra.mxu0 %v1171
  %1267 = vmatmul.f32.gmra.mxu0 %v1168
  %v1268 = vpop.f32.mrf.mxu0
  %v1269 = vadd.f32 0.0, %v1268
  %1270 = vmatmul.f32.gmra.mxu0 %v1169
  %v1271 = vpop.f32.mrf.mxu0
  %v1272 = vadd.f32 0.0, %v1271
  %1273 = vmatmul.f32.gmra.mxu0 %v1170
  %v1274 = vpop.f32.mrf.mxu0
  %v1275 = vadd.f32 0.0, %v1274
  %1276 = vdwg.mxu0
  %1277 = vmatpush.msra.mxu0 %v1247
  %1278 = vmatpush.msra.mxu0 %v1242
  %1279 = vmatpush.msra.mxu0 %v1237
  %1280 = vmatpush.msra.mxu0 %v1232
  %1281 = vmatpush.msra.mxu0 %v1227
  %1282 = vmatpush.msra.mxu0 %v1222
  %1283 = vmatpush.msra.mxu0 %v1217
  %1284 = vmatpush.msra.mxu0 %v1212
  %1285 = vmatpush.msra.mxu0 %v1207
  %1286 = vmatpush.msra.mxu0 %v1202
  %1287 = vmatpush.msra.mxu0 %v1197
  %1288 = vmatpush.msra.mxu0 %v1192
  %1289 = vmatpush.msra.mxu0 %v1187
  %1290 = vmatpush.msra.mxu0 %v1182
  %1291 = vmatpush.msra.mxu0 %v1177
  %1292 = vmatpush.msra.mxu0 %v1172
  %1293 = vmatmul.f32.gmra.mxu0 %v1168
  %v1294 = vpop.f32.mrf.mxu0
  %v1295 = vadd.f32 0.0, %v1294
  %1296 = vmatmul.f32.gmra.mxu0 %v1169
  %v1297 = vpop.f32.mrf.mxu0
  %v1298 = vadd.f32 0.0, %v1297
  %1299 = vmatmul.f32.gmra.mxu0 %v1170
  %v1300 = vpop.f32.mrf.mxu0
  %v1301 = vadd.f32 0.0, %v1300
  %1302 = vdwg.mxu0
  %1303 = vmatpush.msra.mxu0 %v1248
  %1304 = vmatpush.msra.mxu0 %v1243
  %1305 = vmatpush.msra.mxu0 %v1238
  %1306 = vmatpush.msra.mxu0 %v1233
  %1307 = vmatpush.msra.mxu0 %v1228
  %1308 = vmatpush.msra.mxu0 %v1223
  %1309 = vmatpush.msra.mxu0 %v1218
  %1310 = vmatpush.msra.mxu0 %v1213
  %1311 = vmatpush.msra.mxu0 %v1208
  %1312 = vmatpush.msra.mxu0 %v1203
  %1313 = vmatpush.msra.mxu0 %v1198
  %1314 = vmatpush.msra.mxu0 %v1193
  %1315 = vmatpush.msra.mxu0 %v1188
  %1316 = vmatpush.msra.mxu0 %v1183
  %1317 = vmatpush.msra.mxu0 %v1178
  %1318 = vmatpush.msra.mxu0 %v1173
  %1319 = vmatmul.f32.gmra.mxu0 %v1168
  %v1320 = vpop.f32.mrf.mxu0
  %v1321 = vadd.f32 0.0, %v1320
  %1322 = vmatmul.f32.gmra.mxu0 %v1169
  %v1323 = vpop.f32.mrf.mxu0
  %v1324 = vadd.f32 0.0, %v1323
  %1325 = vmatmul.f32.gmra.mxu0 %v1170
  %v1326 = vpop.f32.mrf.mxu0
  %v1327 = vadd.f32 0.0, %v1326
  %1328 = vdwg.mxu0
  %1329 = vmatpush.msra.mxu0 %v1249
  %1330 = vmatpush.msra.mxu0 %v1244
  %1331 = vmatpush.msra.mxu0 %v1239
  %1332 = vmatpush.msra.mxu0 %v1234
  %1333 = vmatpush.msra.mxu0 %v1229
  %1334 = vmatpush.msra.mxu0 %v1224
  %1335 = vmatpush.msra.mxu0 %v1219
  %1336 = vmatpush.msra.mxu0 %v1214
  %1337 = vmatpush.msra.mxu0 %v1209
  %1338 = vmatpush.msra.mxu0 %v1204
  %1339 = vmatpush.msra.mxu0 %v1199
  %1340 = vmatpush.msra.mxu0 %v1194
  %1341 = vmatpush.msra.mxu0 %v1189
  %1342 = vmatpush.msra.mxu0 %v1184
  %1343 = vmatpush.msra.mxu0 %v1179
  %1344 = vmatpush.msra.mxu0 %v1174
  %1345 = vmatmul.f32.gmra.mxu0 %v1168
  %v1346 = vpop.f32.mrf.mxu0
  %v1347 = vadd.f32 0.0, %v1346
  %1348 = vmatmul.f32.gmra.mxu0 %v1169
  %v1349 = vpop.f32.mrf.mxu0
  %v1350 = vadd.f32 0.0, %v1349
  %1351 = vmatmul.f32.gmra.mxu0 %v1170
  %v1352 = vpop.f32.mrf.mxu0
  %v1353 = vadd.f32 0.0, %v1352
  %1354 = vdwg.mxu0
  %1355 = vmatpush.msra.mxu0 %v1250
  %1356 = vmatpush.msra.mxu0 %v1245
  %1357 = vmatpush.msra.mxu0 %v1240
  %1358 = vmatpush.msra.mxu0 %v1235
  %1359 = vmatpush.msra.mxu0 %v1230
  %1360 = vmatpush.msra.mxu0 %v1225
  %1361 = vmatpush.msra.mxu0 %v1220
  %1362 = vmatpush.msra.mxu0 %v1215
  %1363 = vmatpush.msra.mxu0 %v1210
  %1364 = vmatpush.msra.mxu0 %v1205
  %1365 = vmatpush.msra.mxu0 %v1200
  %1366 = vmatpush.msra.mxu0 %v1195
  %1367 = vmatpush.msra.mxu0 %v1190
  %1368 = vmatpush.msra.mxu0 %v1185
  %1369 = vmatpush.msra.mxu0 %v1180
  %1370 = vmatpush.msra.mxu0 %v1175
  %1371 = vmatmul.f32.gmra.mxu0 %v1168
  %v1372 = vpop.f32.mrf.mxu0
  %v1373 = vadd.f32 0.0, %v1372
  %1374 = vmatmul.f32.gmra.mxu0 %v1169
  %v1375 = vpop.f32.mrf.mxu0
  %v1376 = vadd.f32 0.0, %v1375
  %1377 = vmatmul.f32.gmra.mxu0 %v1170
  %v1378 = vpop.f32.mrf.mxu0
  %v1379 = vadd.f32 0.0, %v1378
  %1380 = vdwg.mxu0
  %v1381 = vld [vmem:[%s10] sm:$0xff]
  %v1382 = vld [vmem:[%s10 + $0x8] sm:$0xff]
  %v1383 = vld [vmem:[%s10 + $0x10] sm:$0xff]
  %v1384 = vld [vmem:[%s10 + $0x18] sm:$0xff]
  %v1385 = vld [vmem:[%s10 + $0x20] sm:$0xf]
  %v1386 = vld [vmem:[%s9] sm:$0x1]
  %v1389 = vrot.slane %v1269, 7
  %v1390 = vrot.slane %v1272, 7
  %v1391 = vsel %vm1058, %v1389, %v1390
  %1392 = vrot.lane.b32.xlu0 %v1389, 64
  %v1393 = vpop.permute.xlu0 %1392
  %1394 = vrot.lane.b32.xlu0 %v1391, 64
  %v1395 = vpop.permute.xlu0 %1394
  %v1400 = vrot.slane %v1295, 6
  %v1401 = vrot.slane %v1298, 6
  %v1402 = vsel %vm263, %v1400, %v1401
  %v1405 = vrot.slane %v1295, 5
  %v1406 = vrot.slane %v1298, 5
  %v1407 = vsel %vm1061, %v1405, %v1406
  %1408 = vrot.lane.b32.xlu0 %v1405, 64
  %v1409 = vpop.permute.xlu0 %1408
  %1410 = vrot.lane.b32.xlu0 %v1407, 64
  %v1411 = vpop.permute.xlu0 %1410
  %v1416 = vrot.slane %v1321, 4
  %v1417 = vrot.slane %v1324, 4
  %v1418 = vsel %vm127, %v1416, %v1417
  %v1421 = vrot.slane %v1321, 3
  %v1422 = vrot.slane %v1324, 3
  %v1423 = vsel %vm1064, %v1421, %v1422
  %1424 = vrot.lane.b32.xlu0 %v1421, 64
  %v1425 = vpop.permute.xlu0 %1424
  %1426 = vrot.lane.b32.xlu0 %v1423, 64
  %v1427 = vpop.permute.xlu0 %1426
  %v1432 = vrot.slane %v1347, 2
  %v1433 = vrot.slane %v1350, 2
  %v1434 = vsel %vm1066, %v1432, %v1433
  %v1437 = vrot.slane %v1347, 1
  %v1438 = vrot.slane %v1350, 1
  %v1439 = vsel %vm1068, %v1437, %v1438
  %1440 = vrot.lane.b32.xlu0 %v1437, 64
  %v1441 = vpop.permute.xlu0 %1440
  %1442 = vrot.lane.b32.xlu0 %v1439, 64
  %v1443 = vpop.permute.xlu0 %1442
  %v1446 = vsel %vm1058, %v1272, %v1393
  %v1447 = vsel %vm263, %v1395, %v1400
  %v1448 = vsel %vm1061, %v1402, %v1409
  %v1449 = vsel %vm127, %v1411, %v1416
  %v1450 = vsel %vm1064, %v1418, %v1425
  %v1451 = vsel %vm1066, %v1427, %v1432
  %v1452 = vsel %vm1068, %v1434, %v1441
  %v1454 = vperm.slane %v1386, 0
  %vm1456 = vcmask 662528
  %v1458 = vsel %vm1456, %v1381, 0
  %v1461 = vsel %vm1456, %v1382, 0
  %v1464 = vsel %vm1456, %v1383, 0
  %v1467 = vsel %vm1456, %v1384, 0
  %v1470 = vsel %vm1456, %v1385, 0
  %v1473 = vsel %vm1058, %v1376, 0
  %1475 = vmatpush.msra.mxu0 0.0
  %1476 = vmatpush.msra.mxu0 0.0
  %1477 = vmatpush.msra.mxu0 0.0
  %1478 = vmatpush.msra.mxu0 0.0
  %1479 = vmatpush.msra.mxu0 0.0
  %1480 = vmatpush.msra.mxu0 %v1473
  %1481 = vmatpush.msra.mxu0 %v1373
  %1482 = vmatpush.msra.mxu0 %v1443
  %1483 = vmatpush.msra.mxu0 %v1452
  %1484 = vmatpush.msra.mxu0 %v1451
  %1485 = vmatpush.msra.mxu0 %v1450
  %1486 = vmatpush.msra.mxu0 %v1449
  %1487 = vmatpush.msra.mxu0 %v1448
  %1488 = vmatpush.msra.mxu0 %v1447
  %1489 = vmatpush.msra.mxu0 %v1446
  %1490 = vmatpush.msra.mxu0 %v1269
  %1491 = vmatmul.f32.gmra.mxu0 %v1458
  %v1492 = vpop.f32.mrf.mxu0
  %v1493 = vadd.f32 %v1454, %v1492
  %1494 = vmatmul.f32.gmra.mxu0 %v1461
  %v1495 = vpop.f32.mrf.mxu0
  %v1496 = vadd.f32 %v1454, %v1495
  %1497 = vmatmul.f32.gmra.mxu0 %v1464
  %v1498 = vpop.f32.mrf.mxu0
  %v1499 = vadd.f32 %v1454, %v1498
  %1500 = vmatmul.f32.gmra.mxu0 %v1467
  %v1501 = vpop.f32.mrf.mxu0
  %v1502 = vadd.f32 %v1454, %v1501
  %1503 = vmatmul.f32.gmra.mxu0 %v1470
  %v1504 = vpop.f32.mrf.mxu0
  %v1505 = vadd.f32 %v1454, %v1504
  %1506 = vdwg.mxu0
  %v1508 = vrot.slane %v1272, 1
  %v1509 = vrot.slane %v1275, 1
  %v1510 = vsel %vm1068, %v1508, %v1509
  %1513 = vrot.lane.b32.xlu0 %v1272, 64
  %v1514 = vpop.permute.xlu0 %1513
  %1515 = vrot.lane.b32.xlu0 %v1275, 64
  %v1516 = vpop.permute.xlu0 %1515
  %v1520 = vrot.slane %v1298, 7
  %v1521 = vrot.slane %v1301, 7
  %v1522 = vsel %vm1058, %v1520, %v1521
  %v1525 = vrot.slane %v1301, 6
  %v1526 = vsel %vm263, %v1401, %v1525
  %1527 = vrot.lane.b32.xlu0 %v1401, 64
  %v1528 = vpop.permute.xlu0 %1527
  %1529 = vrot.lane.b32.xlu0 %v1526, 64
  %v1530 = vpop.permute.xlu0 %1529
  %v1534 = vrot.slane %v1324, 5
  %v1535 = vrot.slane %v1327, 5
  %v1536 = vsel %vm1061, %v1534, %v1535
  %v1539 = vrot.slane %v1327, 4
  %v1540 = vsel %vm127, %v1417, %v1539
  %1541 = vrot.lane.b32.xlu0 %v1417, 64
  %v1542 = vpop.permute.xlu0 %1541
  %1543 = vrot.lane.b32.xlu0 %v1540, 64
  %v1544 = vpop.permute.xlu0 %1543
  %v1548 = vrot.slane %v1350, 3
  %v1549 = vrot.slane %v1353, 3
  %v1550 = vsel %vm1064, %v1548, %v1549
  %v1553 = vrot.slane %v1353, 2
  %v1554 = vsel %vm1066, %v1433, %v1553
  %1555 = vrot.lane.b32.xlu0 %v1433, 64
  %v1556 = vpop.permute.xlu0 %1555
  %1557 = vrot.lane.b32.xlu0 %v1554, 64
  %v1558 = vpop.permute.xlu0 %1557
  %v1562 = vrot.slane %v1376, 1
  %v1563 = vrot.slane %v1379, 1
  %v1564 = vsel %vm1068, %v1562, %v1563
  %v1566 = vsel %vm1058, %v1509, %v1514
  %v1567 = vsel %vm263, %v1516, %v1520
  %v1568 = vsel %vm1061, %v1522, %v1528
  %v1569 = vsel %vm127, %v1530, %v1534
  %v1570 = vsel %vm1064, %v1536, %v1542
  %v1571 = vsel %vm1066, %v1544, %v1548
  %v1572 = vsel %vm1068, %v1550, %v1556
  %v1573 = vsel %vm1058, %v1563, 0
  %1575 = vmatpush.msra.mxu0 0.0
  %1576 = vmatpush.msra.mxu0 0.0
  %1577 = vmatpush.msra.mxu0 0.0
  %1578 = vmatpush.msra.mxu0 0.0
  %1579 = vmatpush.msra.mxu0 0.0
  %1580 = vmatpush.msra.mxu0 %v1573
  %1581 = vmatpush.msra.mxu0 %v1564
  %1582 = vmatpush.msra.mxu0 %v1558
  %1583 = vmatpush.msra.mxu0 %v1572
  %1584 = vmatpush.msra.mxu0 %v1571
  %1585 = vmatpush.msra.mxu0 %v1570
  %1586 = vmatpush.msra.mxu0 %v1569
  %1587 = vmatpush.msra.mxu0 %v1568
  %1588 = vmatpush.msra.mxu0 %v1567
  %1589 = vmatpush.msra.mxu0 %v1566
  %1590 = vmatpush.msra.mxu0 %v1510
  %1591 = vmatmul.f32.gmra.mxu0 %v1458
  %v1592 = vpop.f32.mrf.mxu0
  %v1593 = vadd.f32 %v1454, %v1592
  %1594 = vmatmul.f32.gmra.mxu0 %v1461
  %v1595 = vpop.f32.mrf.mxu0
  %v1596 = vadd.f32 %v1454, %v1595
  %1597 = vmatmul.f32.gmra.mxu0 %v1464
  %v1598 = vpop.f32.mrf.mxu0
  %v1599 = vadd.f32 %v1454, %v1598
  %1600 = vmatmul.f32.gmra.mxu0 %v1467
  %v1601 = vpop.f32.mrf.mxu0
  %v1602 = vadd.f32 %v1454, %v1601
  %1603 = vmatmul.f32.gmra.mxu0 %v1470
  %v1604 = vpop.f32.mrf.mxu0
  %v1605 = vadd.f32 %v1454, %v1604
  %1606 = vdwg.mxu0
  %v1612 = vrot.slane %v1593, 4
  %v1613 = vrot.slane %v1596, 4
  %v1614 = vsel %vm127, %v1612, %v1613
  %v1615 = vrot.slane %v1599, 4
  %v1616 = vsel %vm127, %v1613, %v1615
  %v1617 = vrot.slane %v1602, 4
  %v1618 = vsel %vm127, %v1615, %v1617
  %v1619 = vrot.slane %v1605, 4
  %v1620 = vsel %vm127, %v1617, %v1619
  %v1626 = vsel %vm127, %v1505, %v1612
  %vm1627 = vcmp.ge.f32.partialorder %v1493, 0.0
  %vm1628 = vcmp.ge.f32.partialorder %v1496, 0.0
  %vm1629 = vcmp.ge.f32.partialorder %v1499, 0.0
  %vm1630 = vcmp.ge.f32.partialorder %v1502, 0.0
  %vm1631 = vcmp.ge.f32.partialorder %v1626, 0.0
  %vm1632 = vcmp.ge.f32.partialorder %v1614, 0.0
  %vm1633 = vcmp.ge.f32.partialorder %v1616, 0.0
  %vm1634 = vcmp.ge.f32.partialorder %v1618, 0.0
  %vm1635 = vcmp.ge.f32.partialorder %v1620, 0.0
  %v1636 = vmul.f32 %v1493, 0.01
  %v1637 = vmul.f32 %v1496, 0.01
  %v1638 = vmul.f32 %v1499, 0.01
  %v1639 = vmul.f32 %v1502, 0.01
  %v1640 = vmul.f32 %v1626, 0.01
  %v1641 = vmul.f32 %v1614, 0.01
  %v1642 = vmul.f32 %v1616, 0.01
  %v1643 = vmul.f32 %v1618, 0.01
  %v1644 = vmul.f32 %v1620, 0.01
  %v1645 = vsel %vm1627, %v1493, %v1636
  %v1646 = vsel %vm1628, %v1496, %v1637
  %v1647 = vsel %vm1629, %v1499, %v1638
  %v1648 = vsel %vm1630, %v1502, %v1639
  %v1649 = vsel %vm1631, %v1626, %v1640
  %v1650 = vsel %vm1632, %v1614, %v1641
  %v1651 = vsel %vm1633, %v1616, %v1642
  %v1652 = vsel %vm1634, %v1618, %v1643
  %v1653 = vsel %vm1635, %v1620, %v1644
  %v1654 = vld [vmem:[%s11] sm:$0xff]
  %v1655 = vld [vmem:[%s11 + $0x8] sm:$0xff]
  %v1656 = vld [vmem:[%s11 + $0x10] sm:$0xff]
  %v1657 = vld [vmem:[%s11 + $0x18] sm:$0xff]
  %v1658 = vld [vmem:[%s11 + $0x20] sm:$0xff]
  %v1659 = vld [vmem:[%s11 + $0x28] sm:$0xff]
  %v1660 = vld [vmem:[%s11 + $0x30] sm:$0xff]
  %v1661 = vld [vmem:[%s11 + $0x38] sm:$0xff]
  %v1663 = vsel %vm362, %v1645, 0
  %v1666 = vsel %vm362, %v1646, 0
  %v1669 = vsel %vm362, %v1647, 0
  %v1672 = vsel %vm362, %v1648, 0
  %v1675 = vsel %vm362, %v1649, 0
  %v1678 = vsel %vm362, %v1650, 0
  %v1681 = vsel %vm362, %v1651, 0
  %v1684 = vsel %vm362, %v1652, 0
  %v1687 = vsel %vm362, %v1653, 0
  %1689 = vmatpush.msra.mxu0 0.0
  %1690 = vmatpush.msra.mxu0 0.0
  %1691 = vmatpush.msra.mxu0 0.0
  %1692 = vmatpush.msra.mxu0 0.0
  %1693 = vmatpush.msra.mxu0 0.0
  %1694 = vmatpush.msra.mxu0 0.0
  %1695 = vmatpush.msra.mxu0 0.0
  %1696 = vmatpush.msra.mxu0 0.0
  %1697 = vmatpush.msra.mxu0 %v1661
  %1698 = vmatpush.msra.mxu0 %v1660
  %1699 = vmatpush.msra.mxu0 %v1659
  %1700 = vmatpush.msra.mxu0 %v1658
  %1701 = vmatpush.msra.mxu0 %v1657
  %1702 = vmatpush.msra.mxu0 %v1656
  %1703 = vmatpush.msra.mxu0 %v1655
  %1704 = vmatpush.msra.mxu0 %v1654
  %1705 = vmatmul.f32.gmra.mxu0 %v1663
  %v1706 = vpop.f32.mrf.mxu0
  %v1707 = vadd.f32 0.0, %v1706
  %1708 = vmatmul.f32.gmra.mxu0 %v1666
  %v1709 = vpop.f32.mrf.mxu0
  %v1710 = vadd.f32 0.0, %v1709
  %1711 = vmatmul.f32.gmra.mxu0 %v1669
  %v1712 = vpop.f32.mrf.mxu0
  %v1713 = vadd.f32 0.0, %v1712
  %1714 = vmatmul.f32.gmra.mxu0 %v1672
  %v1715 = vpop.f32.mrf.mxu0
  %v1716 = vadd.f32 0.0, %v1715
  %1717 = vmatmul.f32.gmra.mxu0 %v1675
  %v1718 = vpop.f32.mrf.mxu0
  %v1719 = vadd.f32 0.0, %v1718
  %1720 = vmatmul.f32.gmra.mxu0 %v1678
  %v1721 = vpop.f32.mrf.mxu0
  %v1722 = vadd.f32 0.0, %v1721
  %1723 = vmatmul.f32.gmra.mxu0 %v1681
  %v1724 = vpop.f32.mrf.mxu0
  %v1725 = vadd.f32 0.0, %v1724
  %1726 = vmatmul.f32.gmra.mxu0 %v1684
  %v1727 = vpop.f32.mrf.mxu0
  %v1728 = vadd.f32 0.0, %v1727
  %1729 = vmatmul.f32.gmra.mxu0 %v1687
  %v1730 = vpop.f32.mrf.mxu0
  %v1731 = vadd.f32 0.0, %v1730
  %1732 = vdwg.mxu0
  %v1733 = vld [vmem:[%s13] sm:$0xff]
  %v1734 = vld [vmem:[%s13 + $0x8] sm:$0xff]
  %v1735 = vld [vmem:[%s13 + $0x10] sm:$0xff]
  %v1736 = vld [vmem:[%s13 + $0x18] sm:$0xff]
  %v1737 = vld [vmem:[%s13 + $0x20] sm:$0xff]
  %v1738 = vld [vmem:[%s13 + $0x28] sm:$0xff]
  %v1739 = vld [vmem:[%s13 + $0x30] sm:$0xff]
  %v1740 = vld [vmem:[%s13 + $0x38] sm:$0xff]
  %v1741 = vld [vmem:[%s13 + $0x40] sm:$0xff]
  %v1742 = vld [vmem:[%s13 + $0x48] sm:$0xff]
  %v1743 = vld [vmem:[%s13 + $0x50] sm:$0xff]
  %v1744 = vld [vmem:[%s13 + $0x58] sm:$0xff]
  %v1745 = vld [vmem:[%s13 + $0x60] sm:$0xff]
  %v1746 = vld [vmem:[%s13 + $0x68] sm:$0xff]
  %v1747 = vld [vmem:[%s13 + $0x70] sm:$0xff]
  %v1748 = vld [vmem:[%s13 + $0x78] sm:$0xff]
  %v1749 = vld [vmem:[%s13 + $0x80] sm:$0xff]
  %v1750 = vld [vmem:[%s13 + $0x88] sm:$0xff]
  %v1751 = vld [vmem:[%s13 + $0x90] sm:$0xff]
  %v1752 = vld [vmem:[%s13 + $0x98] sm:$0xff]
  %v1753 = vld [vmem:[%s13 + $0xa0] sm:$0xff]
  %v1754 = vld [vmem:[%s13 + $0xa8] sm:$0xff]
  %v1755 = vld [vmem:[%s13 + $0xb0] sm:$0xff]
  %v1756 = vld [vmem:[%s13 + $0xb8] sm:$0xff]
  %v1757 = vld [vmem:[%s13 + $0xc0] sm:$0xff]
  %v1758 = vld [vmem:[%s13 + $0xc8] sm:$0xff]
  %v1759 = vld [vmem:[%s13 + $0xd0] sm:$0xff]
  %v1760 = vld [vmem:[%s13 + $0xd8] sm:$0xff]
  %v1761 = vld [vmem:[%s13 + $0xe0] sm:$0xff]
  %v1762 = vld [vmem:[%s13 + $0xe8] sm:$0xff]
  %v1763 = vld [vmem:[%s13 + $0xf0] sm:$0xff]
  %v1764 = vld [vmem:[%s13 + $0xf8] sm:$0xff]
  %v1765 = vld [vmem:[%s13 + $0x100] sm:$0xff]
  %v1766 = vld [vmem:[%s13 + $0x108] sm:$0xff]
  %v1767 = vld [vmem:[%s13 + $0x110] sm:$0xff]
  %v1768 = vld [vmem:[%s13 + $0x118] sm:$0xff]
  %v1769 = vld [vmem:[%s13 + $0x120] sm:$0xff]
  %v1770 = vld [vmem:[%s13 + $0x128] sm:$0xff]
  %v1771 = vld [vmem:[%s13 + $0x130] sm:$0xff]
  %v1772 = vld [vmem:[%s13 + $0x138] sm:$0xff]
  %v1773 = vld [vmem:[%s13 + $0x140] sm:$0xff]
  %v1774 = vld [vmem:[%s13 + $0x148] sm:$0xff]
  %v1775 = vld [vmem:[%s13 + $0x150] sm:$0xff]
  %v1776 = vld [vmem:[%s13 + $0x158] sm:$0xff]
  %v1777 = vld [vmem:[%s13 + $0x160] sm:$0xff]
  %v1778 = vld [vmem:[%s13 + $0x168] sm:$0x1]
  %v1779 = vld [vmem:[%s13 + $0x170] sm:$0x1]
  %v1780 = vld [vmem:[%s13 + $0x178] sm:$0x1]
  %v1781 = vld [vmem:[%s12] sm:$0x1]
  %v1787 = vrot.slane %v1707, 4
  %v1788 = vrot.slane %v1710, 4
  %v1789 = vsel %vm127, %v1787, %v1788
  %v1790 = vrot.slane %v1713, 4
  %v1791 = vsel %vm127, %v1788, %v1790
  %v1792 = vrot.slane %v1716, 4
  %v1793 = vsel %vm127, %v1790, %v1792
  %v1794 = vrot.slane %v1719, 4
  %v1795 = vsel %vm127, %v1792, %v1794
  %1796 = vrot.lane.b32.xlu0 %v1787, 124
  %v1797 = vpop.permute.xlu0 %1796
  %1798 = vrot.lane.b32.xlu0 %v1789, 124
  %v1799 = vpop.permute.xlu0 %1798
  %1800 = vrot.lane.b32.xlu0 %v1791, 124
  %v1801 = vpop.permute.xlu0 %1800
  %1802 = vrot.lane.b32.xlu0 %v1793, 124
  %v1803 = vpop.permute.xlu0 %1802
  %1804 = vrot.lane.b32.xlu0 %v1795, 124
  %v1805 = vpop.permute.xlu0 %1804
  %1811 = vrot.lane.b32.xlu0 %v1707, 120
  %v1812 = vpop.permute.xlu0 %1811
  %1813 = vrot.lane.b32.xlu0 %v1710, 120
  %v1814 = vpop.permute.xlu0 %1813
  %1815 = vrot.lane.b32.xlu0 %v1713, 120
  %v1816 = vpop.permute.xlu0 %1815
  %1817 = vrot.lane.b32.xlu0 %v1716, 120
  %v1818 = vpop.permute.xlu0 %1817
  %1819 = vrot.lane.b32.xlu0 %v1719, 120
  %v1820 = vpop.permute.xlu0 %1819
  %1826 = vrot.lane.b32.xlu0 %v1787, 116
  %v1827 = vpop.permute.xlu0 %1826
  %1828 = vrot.lane.b32.xlu0 %v1789, 116
  %v1829 = vpop.permute.xlu0 %1828
  %1830 = vrot.lane.b32.xlu0 %v1791, 116
  %v1831 = vpop.permute.xlu0 %1830
  %1832 = vrot.lane.b32.xlu0 %v1793, 116
  %v1833 = vpop.permute.xlu0 %1832
  %1834 = vrot.lane.b32.xlu0 %v1795, 116
  %v1835 = vpop.permute.xlu0 %1834
  %1841 = vrot.lane.b32.xlu0 %v1707, 112
  %v1842 = vpop.permute.xlu0 %1841
  %1843 = vrot.lane.b32.xlu0 %v1710, 112
  %v1844 = vpop.permute.xlu0 %1843
  %1845 = vrot.lane.b32.xlu0 %v1713, 112
  %v1846 = vpop.permute.xlu0 %1845
  %1847 = vrot.lane.b32.xlu0 %v1716, 112
  %v1848 = vpop.permute.xlu0 %1847
  %1849 = vrot.lane.b32.xlu0 %v1719, 112
  %v1850 = vpop.permute.xlu0 %1849
  %1856 = vrot.lane.b32.xlu0 %v1787, 108
  %v1857 = vpop.permute.xlu0 %1856
  %1858 = vrot.lane.b32.xlu0 %v1789, 108
  %v1859 = vpop.permute.xlu0 %1858
  %1860 = vrot.lane.b32.xlu0 %v1791, 108
  %v1861 = vpop.permute.xlu0 %1860
  %1862 = vrot.lane.b32.xlu0 %v1793, 108
  %v1863 = vpop.permute.xlu0 %1862
  %1864 = vrot.lane.b32.xlu0 %v1795, 108
  %v1865 = vpop.permute.xlu0 %1864
  %1871 = vrot.lane.b32.xlu0 %v1707, 104
  %v1872 = vpop.permute.xlu0 %1871
  %1873 = vrot.lane.b32.xlu0 %v1710, 104
  %v1874 = vpop.permute.xlu0 %1873
  %1875 = vrot.lane.b32.xlu0 %v1713, 104
  %v1876 = vpop.permute.xlu0 %1875
  %1877 = vrot.lane.b32.xlu0 %v1716, 104
  %v1878 = vpop.permute.xlu0 %1877
  %1879 = vrot.lane.b32.xlu0 %v1719, 104
  %v1880 = vpop.permute.xlu0 %1879
  %1886 = vrot.lane.b32.xlu0 %v1787, 100
  %v1887 = vpop.permute.xlu0 %1886
  %1888 = vrot.lane.b32.xlu0 %v1789, 100
  %v1889 = vpop.permute.xlu0 %1888
  %1890 = vrot.lane.b32.xlu0 %v1791, 100
  %v1891 = vpop.permute.xlu0 %1890
  %1892 = vrot.lane.b32.xlu0 %v1793, 100
  %v1893 = vpop.permute.xlu0 %1892
  %1894 = vrot.lane.b32.xlu0 %v1795, 100
  %v1895 = vpop.permute.xlu0 %1894
  %1901 = vrot.lane.b32.xlu0 %v1707, 96
  %v1902 = vpop.permute.xlu0 %1901
  %1903 = vrot.lane.b32.xlu0 %v1710, 96
  %v1904 = vpop.permute.xlu0 %1903
  %1905 = vrot.lane.b32.xlu0 %v1713, 96
  %v1906 = vpop.permute.xlu0 %1905
  %1907 = vrot.lane.b32.xlu0 %v1716, 96
  %v1908 = vpop.permute.xlu0 %1907
  %1909 = vrot.lane.b32.xlu0 %v1719, 96
  %v1910 = vpop.permute.xlu0 %1909
  %v1915 = vsel %vm127, %v1719, %v1797
  %v1916 = vsel %vm127, %v1820, %v1827
  %v1917 = vsel %vm127, %v1850, %v1857
  %v1918 = vsel %vm127, %v1880, %v1887
  %v1920 = vperm.slane %v1781, 0
  %vm1922 = vcmask 556032
  %v1924 = vsel %vm1922, %v1735, 0
  %v1927 = vsel %vm1922, %v1738, 0
  %v1930 = vsel %vm1922, %v1741, 0
  %v1933 = vsel %vm1922, %v1744, 0
  %v1936 = vsel %vm1922, %v1747, 0
  %v1939 = vsel %vm1922, %v1750, 0
  %v1942 = vsel %vm1922, %v1753, 0
  %v1945 = vsel %vm1922, %v1756, 0
  %v1948 = vsel %vm1922, %v1759, 0
  %v1951 = vsel %vm1922, %v1762, 0
  %v1954 = vsel %vm1922, %v1765, 0
  %v1957 = vsel %vm1922, %v1768, 0
  %v1960 = vsel %vm1922, %v1771, 0
  %v1963 = vsel %vm1922, %v1774, 0
  %v1966 = vsel %vm1922, %v1777, 0
  %v1969 = vsel %vm1922, %v1780, 0
  %v1971 = vsel %vm127, %v1910, 0
  %1973 = vmatpush.msra.mxu0 %v1831
  %1974 = vmatpush.msra.mxu0 %v1829
  %1975 = vmatpush.msra.mxu0 %v1916
  %1976 = vmatpush.msra.mxu0 %v1818
  %1977 = vmatpush.msra.mxu0 %v1816
  %1978 = vmatpush.msra.mxu0 %v1814
  %1979 = vmatpush.msra.mxu0 %v1812
  %1980 = vmatpush.msra.mxu0 %v1805
  %1981 = vmatpush.msra.mxu0 %v1803
  %1982 = vmatpush.msra.mxu0 %v1801
  %1983 = vmatpush.msra.mxu0 %v1799
  %1984 = vmatpush.msra.mxu0 %v1915
  %1985 = vmatpush.msra.mxu0 %v1716
  %1986 = vmatpush.msra.mxu0 %v1713
  %1987 = vmatpush.msra.mxu0 %v1710
  %1988 = vmatpush.msra.mxu0 %v1707
  %1989 = vmatmul.f32.gmra.mxu0 %v1733
  %v1990 = vpop.f32.mrf.mxu0
  %v1991 = vadd.f32 %v1920, %v1990
  %1992 = vmatmul.f32.gmra.mxu0 %v1736
  %v1993 = vpop.f32.mrf.mxu0
  %v1994 = vadd.f32 %v1920, %v1993
  %1995 = vmatmul.f32.gmra.mxu0 %v1739
  %v1996 = vpop.f32.mrf.mxu0
  %v1997 = vadd.f32 %v1920, %v1996
  %1998 = vmatmul.f32.gmra.mxu0 %v1742
  %v1999 = vpop.f32.mrf.mxu0
  %v2000 = vadd.f32 %v1920, %v1999
  %2001 = vmatmul.f32.gmra.mxu0 %v1745
  %v2002 = vpop.f32.mrf.mxu0
  %v2003 = vadd.f32 %v1920, %v2002
  %2004 = vmatmul.f32.gmra.mxu0 %v1748
  %v2005 = vpop.f32.mrf.mxu0
  %v2006 = vadd.f32 %v1920, %v2005
  %2007 = vmatmul.f32.gmra.mxu0 %v1751
  %v2008 = vpop.f32.mrf.mxu0
  %v2009 = vadd.f32 %v1920, %v2008
  %2010 = vmatmul.f32.gmra.mxu0 %v1754
  %v2011 = vpop.f32.mrf.mxu0
  %v2012 = vadd.f32 %v1920, %v2011
  %2013 = vmatmul.f32.gmra.mxu0 %v1757
  %v2014 = vpop.f32.mrf.mxu0
  %v2015 = vadd.f32 %v1920, %v2014
  %2016 = vmatmul.f32.gmra.mxu0 %v1760
  %v2017 = vpop.f32.mrf.mxu0
  %v2018 = vadd.f32 %v1920, %v2017
  %2019 = vmatmul.f32.gmra.mxu0 %v1763
  %v2020 = vpop.f32.mrf.mxu0
  %v2021 = vadd.f32 %v1920, %v2020
  %2022 = vmatmul.f32.gmra.mxu0 %v1766
  %v2023 = vpop.f32.mrf.mxu0
  %v2024 = vadd.f32 %v1920, %v2023
  %2025 = vmatmul.f32.gmra.mxu0 %v1769
  %v2026 = vpop.f32.mrf.mxu0
  %v2027 = vadd.f32 %v1920, %v2026
  %2028 = vmatmul.f32.gmra.mxu0 %v1772
  %v2029 = vpop.f32.mrf.mxu0
  %v2030 = vadd.f32 %v1920, %v2029
  %2031 = vmatmul.f32.gmra.mxu0 %v1775
  %v2032 = vpop.f32.mrf.mxu0
  %v2033 = vadd.f32 %v1920, %v2032
  %2034 = vmatmul.f32.gmra.mxu0 %v1778
  %v2035 = vpop.f32.mrf.mxu0
  %v2036 = vadd.f32 %v1920, %v2035
  %2037 = vdwg.mxu0
  %2038 = vmatpush.msra.mxu0 %v1918
  %2039 = vmatpush.msra.mxu0 %v1878
  %2040 = vmatpush.msra.mxu0 %v1876
  %2041 = vmatpush.msra.mxu0 %v1874
  %2042 = vmatpush.msra.mxu0 %v1872
  %2043 = vmatpush.msra.mxu0 %v1865
  %2044 = vmatpush.msra.mxu0 %v1863
  %2045 = vmatpush.msra.mxu0 %v1861
  %2046 = vmatpush.msra.mxu0 %v1859
  %2047 = vmatpush.msra.mxu0 %v1917
  %2048 = vmatpush.msra.mxu0 %v1848
  %2049 = vmatpush.msra.mxu0 %v1846
  %2050 = vmatpush.msra.mxu0 %v1844
  %2051 = vmatpush.msra.mxu0 %v1842
  %2052 = vmatpush.msra.mxu0 %v1835
  %2053 = vmatpush.msra.mxu0 %v1833
  %2054 = vmatmul.f32.gmra.mxu0 %v1734
  %v2055 = vpop.f32.mrf.mxu0
  %v2056 = vadd.f32 %v1991, %v2055
  %2057 = vmatmul.f32.gmra.mxu0 %v1737
  %v2058 = vpop.f32.mrf.mxu0
  %v2059 = vadd.f32 %v1994, %v2058
  %2060 = vmatmul.f32.gmra.mxu0 %v1740
  %v2061 = vpop.f32.mrf.mxu0
  %v2062 = vadd.f32 %v1997, %v2061
  %2063 = vmatmul.f32.gmra.mxu0 %v1743
  %v2064 = vpop.f32.mrf.mxu0
  %v2065 = vadd.f32 %v2000, %v2064
  %2066 = vmatmul.f32.gmra.mxu0 %v1746
  %v2067 = vpop.f32.mrf.mxu0
  %v2068 = vadd.f32 %v2003, %v2067
  %2069 = vmatmul.f32.gmra.mxu0 %v1749
  %v2070 = vpop.f32.mrf.mxu0
  %v2071 = vadd.f32 %v2006, %v2070
  %2072 = vmatmul.f32.gmra.mxu0 %v1752
  %v2073 = vpop.f32.mrf.mxu0
  %v2074 = vadd.f32 %v2009, %v2073
  %2075 = vmatmul.f32.gmra.mxu0 %v1755
  %v2076 = vpop.f32.mrf.mxu0
  %v2077 = vadd.f32 %v2012, %v2076
  %2078 = vmatmul.f32.gmra.mxu0 %v1758
  %v2079 = vpop.f32.mrf.mxu0
  %v2080 = vadd.f32 %v2015, %v2079
  %2081 = vmatmul.f32.gmra.mxu0 %v1761
  %v2082 = vpop.f32.mrf.mxu0
  %v2083 = vadd.f32 %v2018, %v2082
  %2084 = vmatmul.f32.gmra.mxu0 %v1764
  %v2085 = vpop.f32.mrf.mxu0
  %v2086 = vadd.f32 %v2021, %v2085
  %2087 = vmatmul.f32.gmra.mxu0 %v1767
  %v2088 = vpop.f32.mrf.mxu0
  %v2089 = vadd.f32 %v2024, %v2088
  %2090 = vmatmul.f32.gmra.mxu0 %v1770
  %v2091 = vpop.f32.mrf.mxu0
  %v2092 = vadd.f32 %v2027, %v2091
  %2093 = vmatmul.f32.gmra.mxu0 %v1773
  %v2094 = vpop.f32.mrf.mxu0
  %v2095 = vadd.f32 %v2030, %v2094
  %2096 = vmatmul.f32.gmra.mxu0 %v1776
  %v2097 = vpop.f32.mrf.mxu0
  %v2098 = vadd.f32 %v2033, %v2097
  %2099 = vmatmul.f32.gmra.mxu0 %v1779
  %v2100 = vpop.f32.mrf.mxu0
  %v2101 = vadd.f32 %v2036, %v2100
  %2102 = vdwg.mxu0
  %2103 = vmatpush.msra.mxu0 0.0
  %2104 = vmatpush.msra.mxu0 0.0
  %2105 = vmatpush.msra.mxu0 0.0
  %2106 = vmatpush.msra.mxu0 0.0
  %2107 = vmatpush.msra.mxu0 0.0
  %2108 = vmatpush.msra.mxu0 0.0
  %2109 = vmatpush.msra.mxu0 0.0
  %2110 = vmatpush.msra.mxu0 %v1971
  %2111 = vmatpush.msra.mxu0 %v1908
  %2112 = vmatpush.msra.mxu0 %v1906
  %2113 = vmatpush.msra.mxu0 %v1904
  %2114 = vmatpush.msra.mxu0 %v1902
  %2115 = vmatpush.msra.mxu0 %v1895
  %2116 = vmatpush.msra.mxu0 %v1893
  %2117 = vmatpush.msra.mxu0 %v1891
  %2118 = vmatpush.msra.mxu0 %v1889
  %2119 = vmatmul.f32.gmra.mxu0 %v1924
  %v2120 = vpop.f32.mrf.mxu0
  %v2121 = vadd.f32 %v2056, %v2120
  %2122 = vmatmul.f32.gmra.mxu0 %v1927
  %v2123 = vpop.f32.mrf.mxu0
  %v2124 = vadd.f32 %v2059, %v2123
  %2125 = vmatmul.f32.gmra.mxu0 %v1930
  %v2126 = vpop.f32.mrf.mxu0
  %v2127 = vadd.f32 %v2062, %v2126
  %2128 = vmatmul.f32.gmra.mxu0 %v1933
  %v2129 = vpop.f32.mrf.mxu0
  %v2130 = vadd.f32 %v2065, %v2129
  %2131 = vmatmul.f32.gmra.mxu0 %v1936
  %v2132 = vpop.f32.mrf.mxu0
  %v2133 = vadd.f32 %v2068, %v2132
  %2134 = vmatmul.f32.gmra.mxu0 %v1939
  %v2135 = vpop.f32.mrf.mxu0
  %v2136 = vadd.f32 %v2071, %v2135
  %2137 = vmatmul.f32.gmra.mxu0 %v1942
  %v2138 = vpop.f32.mrf.mxu0
  %v2139 = vadd.f32 %v2074, %v2138
  %2140 = vmatmul.f32.gmra.mxu0 %v1945
  %v2141 = vpop.f32.mrf.mxu0
  %v2142 = vadd.f32 %v2077, %v2141
  %2143 = vmatmul.f32.gmra.mxu0 %v1948
  %v2144 = vpop.f32.mrf.mxu0
  %v2145 = vadd.f32 %v2080, %v2144
  %2146 = vmatmul.f32.gmra.mxu0 %v1951
  %v2147 = vpop.f32.mrf.mxu0
  %v2148 = vadd.f32 %v2083, %v2147
  %2149 = vmatmul.f32.gmra.mxu0 %v1954
  %v2150 = vpop.f32.mrf.mxu0
  %v2151 = vadd.f32 %v2086, %v2150
  %2152 = vmatmul.f32.gmra.mxu0 %v1957
  %v2153 = vpop.f32.mrf.mxu0
  %v2154 = vadd.f32 %v2089, %v2153
  %2155 = vmatmul.f32.gmra.mxu0 %v1960
  %v2156 = vpop.f32.mrf.mxu0
  %v2157 = vadd.f32 %v2092, %v2156
  %2158 = vmatmul.f32.gmra.mxu0 %v1963
  %v2159 = vpop.f32.mrf.mxu0
  %v2160 = vadd.f32 %v2095, %v2159
  %2161 = vmatmul.f32.gmra.mxu0 %v1966
  %v2162 = vpop.f32.mrf.mxu0
  %v2163 = vadd.f32 %v2098, %v2162
  %2164 = vmatmul.f32.gmra.mxu0 %v1969
  %v2165 = vpop.f32.mrf.mxu0
  %v2166 = vadd.f32 %v2101, %v2165
  %2167 = vdwg.mxu0
  %v2172 = vrot.slane %v1722, 4
  %v2173 = vsel %vm127, %v1794, %v2172
  %v2174 = vrot.slane %v1725, 4
  %v2175 = vsel %vm127, %v2172, %v2174
  %v2176 = vrot.slane %v1728, 4
  %v2177 = vsel %vm127, %v2174, %v2176
  %v2178 = vrot.slane %v1731, 4
  %v2179 = vsel %vm127, %v2176, %v2178
  %2185 = vrot.lane.b32.xlu0 %v1719, 124
  %v2186 = vpop.permute.xlu0 %2185
  %2187 = vrot.lane.b32.xlu0 %v1722, 124
  %v2188 = vpop.permute.xlu0 %2187
  %2189 = vrot.lane.b32.xlu0 %v1725, 124
  %v2190 = vpop.permute.xlu0 %2189
  %2191 = vrot.lane.b32.xlu0 %v1728, 124
  %v2192 = vpop.permute.xlu0 %2191
  %2193 = vrot.lane.b32.xlu0 %v1731, 124
  %v2194 = vpop.permute.xlu0 %2193
  %2200 = vrot.lane.b32.xlu0 %v2173, 120
  %v2201 = vpop.permute.xlu0 %2200
  %2202 = vrot.lane.b32.xlu0 %v2175, 120
  %v2203 = vpop.permute.xlu0 %2202
  %2204 = vrot.lane.b32.xlu0 %v2177, 120
  %v2205 = vpop.permute.xlu0 %2204
  %2206 = vrot.lane.b32.xlu0 %v2179, 120
  %v2207 = vpop.permute.xlu0 %2206
  %2208 = vrot.lane.b32.xlu0 %v2178, 120
  %v2209 = vpop.permute.xlu0 %2208
  %2215 = vrot.lane.b32.xlu0 %v1719, 116
  %v2216 = vpop.permute.xlu0 %2215
  %2217 = vrot.lane.b32.xlu0 %v1722, 116
  %v2218 = vpop.permute.xlu0 %2217
  %2219 = vrot.lane.b32.xlu0 %v1725, 116
  %v2220 = vpop.permute.xlu0 %2219
  %2221 = vrot.lane.b32.xlu0 %v1728, 116
  %v2222 = vpop.permute.xlu0 %2221
  %2223 = vrot.lane.b32.xlu0 %v1731, 116
  %v2224 = vpop.permute.xlu0 %2223
  %2230 = vrot.lane.b32.xlu0 %v2173, 112
  %v2231 = vpop.permute.xlu0 %2230
  %2232 = vrot.lane.b32.xlu0 %v2175, 112
  %v2233 = vpop.permute.xlu0 %2232
  %2234 = vrot.lane.b32.xlu0 %v2177, 112
  %v2235 = vpop.permute.xlu0 %2234
  %2236 = vrot.lane.b32.xlu0 %v2179, 112
  %v2237 = vpop.permute.xlu0 %2236
  %2238 = vrot.lane.b32.xlu0 %v2178, 112
  %v2239 = vpop.permute.xlu0 %2238
  %2245 = vrot.lane.b32.xlu0 %v1719, 108
  %v2246 = vpop.permute.xlu0 %2245
  %2247 = vrot.lane.b32.xlu0 %v1722, 108
  %v2248 = vpop.permute.xlu0 %2247
  %2249 = vrot.lane.b32.xlu0 %v1725, 108
  %v2250 = vpop.permute.xlu0 %2249
  %2251 = vrot.lane.b32.xlu0 %v1728, 108
  %v2252 = vpop.permute.xlu0 %2251
  %2253 = vrot.lane.b32.xlu0 %v1731, 108
  %v2254 = vpop.permute.xlu0 %2253
  %2260 = vrot.lane.b32.xlu0 %v2173, 104
  %v2261 = vpop.permute.xlu0 %2260
  %2262 = vrot.lane.b32.xlu0 %v2175, 104
  %v2263 = vpop.permute.xlu0 %2262
  %2264 = vrot.lane.b32.xlu0 %v2177, 104
  %v2265 = vpop.permute.xlu0 %2264
  %2266 = vrot.lane.b32.xlu0 %v2179, 104
  %v2267 = vpop.permute.xlu0 %2266
  %2268 = vrot.lane.b32.xlu0 %v2178, 104
  %v2269 = vpop.permute.xlu0 %2268
  %2275 = vrot.lane.b32.xlu0 %v1719, 100
  %v2276 = vpop.permute.xlu0 %2275
  %2277 = vrot.lane.b32.xlu0 %v1722, 100
  %v2278 = vpop.permute.xlu0 %2277
  %2279 = vrot.lane.b32.xlu0 %v1725, 100
  %v2280 = vpop.permute.xlu0 %2279
  %2281 = vrot.lane.b32.xlu0 %v1728, 100
  %v2282 = vpop.permute.xlu0 %2281
  %2283 = vrot.lane.b32.xlu0 %v1731, 100
  %v2284 = vpop.permute.xlu0 %2283
  %2290 = vrot.lane.b32.xlu0 %v2173, 96
  %v2291 = vpop.permute.xlu0 %2290
  %2292 = vrot.lane.b32.xlu0 %v2175, 96
  %v2293 = vpop.permute.xlu0 %2292
  %2294 = vrot.lane.b32.xlu0 %v2177, 96
  %v2295 = vpop.permute.xlu0 %2294
  %2296 = vrot.lane.b32.xlu0 %v2179, 96
  %v2297 = vpop.permute.xlu0 %2296
  %2298 = vrot.lane.b32.xlu0 %v2178, 96
  %v2299 = vpop.permute.xlu0 %2298
  %v2304 = vsel %vm127, %v2178, %v2186
  %v2305 = vsel %vm127, %v2209, %v2216
  %v2306 = vsel %vm127, %v2239, %v2246
  %v2307 = vsel %vm127, %v2269, %v2276
  %v2308 = vsel %vm127, %v2299, 0
  %2310 = vmatpush.msra.mxu0 %v2220
  %2311 = vmatpush.msra.mxu0 %v2218
  %2312 = vmatpush.msra.mxu0 %v2305
  %2313 = vmatpush.msra.mxu0 %v2207
  %2314 = vmatpush.msra.mxu0 %v2205
  %2315 = vmatpush.msra.mxu0 %v2203
  %2316 = vmatpush.msra.mxu0 %v2201
  %2317 = vmatpush.msra.mxu0 %v2194
  %2318 = vmatpush.msra.mxu0 %v2192
  %2319 = vmatpush.msra.mxu0 %v2190
  %2320 = vmatpush.msra.mxu0 %v2188
  %2321 = vmatpush.msra.mxu0 %v2304
  %2322 = vmatpush.msra.mxu0 %v2179
  %2323 = vmatpush.msra.mxu0 %v2177
  %2324 = vmatpush.msra.mxu0 %v2175
  %2325 = vmatpush.msra.mxu0 %v2173
  %2326 = vmatmul.f32.gmra.mxu0 %v1733
  %v2327 = vpop.f32.mrf.mxu0
  %v2328 = vadd.f32 %v1920, %v2327
  %2329 = vmatmul.f32.gmra.mxu0 %v1736
  %v2330 = vpop.f32.mrf.mxu0
  %v2331 = vadd.f32 %v1920, %v2330
  %2332 = vmatmul.f32.gmra.mxu0 %v1739
  %v2333 = vpop.f32.mrf.mxu0
  %v2334 = vadd.f32 %v1920, %v2333
  %2335 = vmatmul.f32.gmra.mxu0 %v1742
  %v2336 = vpop.f32.mrf.mxu0
  %v2337 = vadd.f32 %v1920, %v2336
  %2338 = vmatmul.f32.gmra.mxu0 %v1745
  %v2339 = vpop.f32.mrf.mxu0
  %v2340 = vadd.f32 %v1920, %v2339
  %2341 = vmatmul.f32.gmra.mxu0 %v1748
  %v2342 = vpop.f32.mrf.mxu0
  %v2343 = vadd.f32 %v1920, %v2342
  %2344 = vmatmul.f32.gmra.mxu0 %v1751
  %v2345 = vpop.f32.mrf.mxu0
  %v2346 = vadd.f32 %v1920, %v2345
  %2347 = vmatmul.f32.gmra.mxu0 %v1754
  %v2348 = vpop.f32.mrf.mxu0
  %v2349 = vadd.f32 %v1920, %v2348
  %2350 = vmatmul.f32.gmra.mxu0 %v1757
  %v2351 = vpop.f32.mrf.mxu0
  %v2352 = vadd.f32 %v1920, %v2351
  %2353 = vmatmul.f32.gmra.mxu0 %v1760
  %v2354 = vpop.f32.mrf.mxu0
  %v2355 = vadd.f32 %v1920, %v2354
  %2356 = vmatmul.f32.gmra.mxu0 %v1763
  %v2357 = vpop.f32.mrf.mxu0
  %v2358 = vadd.f32 %v1920, %v2357
  %2359 = vmatmul.f32.gmra.mxu0 %v1766
  %v2360 = vpop.f32.mrf.mxu0
  %v2361 = vadd.f32 %v1920, %v2360
  %2362 = vmatmul.f32.gmra.mxu0 %v1769
  %v2363 = vpop.f32.mrf.mxu0
  %v2364 = vadd.f32 %v1920, %v2363
  %2365 = vmatmul.f32.gmra.mxu0 %v1772
  %v2366 = vpop.f32.mrf.mxu0
  %v2367 = vadd.f32 %v1920, %v2366
  %2368 = vmatmul.f32.gmra.mxu0 %v1775
  %v2369 = vpop.f32.mrf.mxu0
  %v2370 = vadd.f32 %v1920, %v2369
  %2371 = vmatmul.f32.gmra.mxu0 %v1778
  %v2372 = vpop.f32.mrf.mxu0
  %v2373 = vadd.f32 %v1920, %v2372
  %2374 = vdwg.mxu0
  %2375 = vmatpush.msra.mxu0 %v2307
  %2376 = vmatpush.msra.mxu0 %v2267
  %2377 = vmatpush.msra.mxu0 %v2265
  %2378 = vmatpush.msra.mxu0 %v2263
  %2379 = vmatpush.msra.mxu0 %v2261
  %2380 = vmatpush.msra.mxu0 %v2254
  %2381 = vmatpush.msra.mxu0 %v2252
  %2382 = vmatpush.msra.mxu0 %v2250
  %2383 = vmatpush.msra.mxu0 %v2248
  %2384 = vmatpush.msra.mxu0 %v2306
  %2385 = vmatpush.msra.mxu0 %v2237
  %2386 = vmatpush.msra.mxu0 %v2235
  %2387 = vmatpush.msra.mxu0 %v2233
  %2388 = vmatpush.msra.mxu0 %v2231
  %2389 = vmatpush.msra.mxu0 %v2224
  %2390 = vmatpush.msra.mxu0 %v2222
  %2391 = vmatmul.f32.gmra.mxu0 %v1734
  %v2392 = vpop.f32.mrf.mxu0
  %v2393 = vadd.f32 %v2328, %v2392
  %2394 = vmatmul.f32.gmra.mxu0 %v1737
  %v2395 = vpop.f32.mrf.mxu0
  %v2396 = vadd.f32 %v2331, %v2395
  %2397 = vmatmul.f32.gmra.mxu0 %v1740
  %v2398 = vpop.f32.mrf.mxu0
  %v2399 = vadd.f32 %v2334, %v2398
  %2400 = vmatmul.f32.gmra.mxu0 %v1743
  %v2401 = vpop.f32.mrf.mxu0
  %v2402 = vadd.f32 %v2337, %v2401
  %2403 = vmatmul.f32.gmra.mxu0 %v1746
  %v2404 = vpop.f32.mrf.mxu0
  %v2405 = vadd.f32 %v2340, %v2404
  %2406 = vmatmul.f32.gmra.mxu0 %v1749
  %v2407 = vpop.f32.mrf.mxu0
  %v2408 = vadd.f32 %v2343, %v2407
  %2409 = vmatmul.f32.gmra.mxu0 %v1752
  %v2410 = vpop.f32.mrf.mxu0
  %v2411 = vadd.f32 %v2346, %v2410
  %2412 = vmatmul.f32.gmra.mxu0 %v1755
  %v2413 = vpop.f32.mrf.mxu0
  %v2414 = vadd.f32 %v2349, %v2413
  %2415 = vmatmul.f32.gmra.mxu0 %v1758
  %v2416 = vpop.f32.mrf.mxu0
  %v2417 = vadd.f32 %v2352, %v2416
  %2418 = vmatmul.f32.gmra.mxu0 %v1761
  %v2419 = vpop.f32.mrf.mxu0
  %v2420 = vadd.f32 %v2355, %v2419
  %2421 = vmatmul.f32.gmra.mxu0 %v1764
  %v2422 = vpop.f32.mrf.mxu0
  %v2423 = vadd.f32 %v2358, %v2422
  %2424 = vmatmul.f32.gmra.mxu0 %v1767
  %v2425 = vpop.f32.mrf.mxu0
  %v2426 = vadd.f32 %v2361, %v2425
  %2427 = vmatmul.f32.gmra.mxu0 %v1770
  %v2428 = vpop.f32.mrf.mxu0
  %v2429 = vadd.f32 %v2364, %v2428
  %2430 = vmatmul.f32.gmra.mxu0 %v1773
  %v2431 = vpop.f32.mrf.mxu0
  %v2432 = vadd.f32 %v2367, %v2431
  %2433 = vmatmul.f32.gmra.mxu0 %v1776
  %v2434 = vpop.f32.mrf.mxu0
  %v2435 = vadd.f32 %v2370, %v2434
  %2436 = vmatmul.f32.gmra.mxu0 %v1779
  %v2437 = vpop.f32.mrf.mxu0
  %v2438 = vadd.f32 %v2373, %v2437
  %2439 = vdwg.mxu0
  %2440 = vmatpush.msra.mxu0 0.0
  %2441 = vmatpush.msra.mxu0 0.0
  %2442 = vmatpush.msra.mxu0 0.0
  %2443 = vmatpush.msra.mxu0 0.0
  %2444 = vmatpush.msra.mxu0 0.0
  %2445 = vmatpush.msra.mxu0 0.0
  %2446 = vmatpush.msra.mxu0 0.0
  %2447 = vmatpush.msra.mxu0 %v2308
  %2448 = vmatpush.msra.mxu0 %v2297
  %2449 = vmatpush.msra.mxu0 %v2295
  %2450 = vmatpush.msra.mxu0 %v2293
  %2451 = vmatpush.msra.mxu0 %v2291
  %2452 = vmatpush.msra.mxu0 %v2284
  %2453 = vmatpush.msra.mxu0 %v2282
  %2454 = vmatpush.msra.mxu0 %v2280
  %2455 = vmatpush.msra.mxu0 %v2278
  %2456 = vmatmul.f32.gmra.mxu0 %v1924
  %v2457 = vpop.f32.mrf.mxu0
  %v2458 = vadd.f32 %v2393, %v2457
  %2459 = vmatmul.f32.gmra.mxu0 %v1927
  %v2460 = vpop.f32.mrf.mxu0
  %v2461 = vadd.f32 %v2396, %v2460
  %2462 = vmatmul.f32.gmra.mxu0 %v1930
  %v2463 = vpop.f32.mrf.mxu0
  %v2464 = vadd.f32 %v2399, %v2463
  %2465 = vmatmul.f32.gmra.mxu0 %v1933
  %v2466 = vpop.f32.mrf.mxu0
  %v2467 = vadd.f32 %v2402, %v2466
  %2468 = vmatmul.f32.gmra.mxu0 %v1936
  %v2469 = vpop.f32.mrf.mxu0
  %v2470 = vadd.f32 %v2405, %v2469
  %2471 = vmatmul.f32.gmra.mxu0 %v1939
  %v2472 = vpop.f32.mrf.mxu0
  %v2473 = vadd.f32 %v2408, %v2472
  %2474 = vmatmul.f32.gmra.mxu0 %v1942
  %v2475 = vpop.f32.mrf.mxu0
  %v2476 = vadd.f32 %v2411, %v2475
  %2477 = vmatmul.f32.gmra.mxu0 %v1945
  %v2478 = vpop.f32.mrf.mxu0
  %v2479 = vadd.f32 %v2414, %v2478
  %2480 = vmatmul.f32.gmra.mxu0 %v1948
  %v2481 = vpop.f32.mrf.mxu0
  %v2482 = vadd.f32 %v2417, %v2481
  %2483 = vmatmul.f32.gmra.mxu0 %v1951
  %v2484 = vpop.f32.mrf.mxu0
  %v2485 = vadd.f32 %v2420, %v2484
  %2486 = vmatmul.f32.gmra.mxu0 %v1954
  %v2487 = vpop.f32.mrf.mxu0
  %v2488 = vadd.f32 %v2423, %v2487
  %2489 = vmatmul.f32.gmra.mxu0 %v1957
  %v2490 = vpop.f32.mrf.mxu0
  %v2491 = vadd.f32 %v2426, %v2490
  %2492 = vmatmul.f32.gmra.mxu0 %v1960
  %v2493 = vpop.f32.mrf.mxu0
  %v2494 = vadd.f32 %v2429, %v2493
  %2495 = vmatmul.f32.gmra.mxu0 %v1963
  %v2496 = vpop.f32.mrf.mxu0
  %v2497 = vadd.f32 %v2432, %v2496
  %2498 = vmatmul.f32.gmra.mxu0 %v1966
  %v2499 = vpop.f32.mrf.mxu0
  %v2500 = vadd.f32 %v2435, %v2499
  %2501 = vmatmul.f32.gmra.mxu0 %v1969
  %v2502 = vpop.f32.mrf.mxu0
  %v2503 = vadd.f32 %v2438, %v2502
  %2504 = vdwg.mxu0
  %2505 = vxpose.xlu0.b32.start [1/16] %v2121, 128
  %2506 = vxpose.xlu0.b32.cont [2/16] %v2124, 128
  %2507 = vxpose.xlu0.b32.cont [3/16] %v2127, 128
  %2508 = vxpose.xlu0.b32.cont [4/16] %v2130, 128
  %2509 = vxpose.xlu0.b32.cont [5/16] %v2133, 128
  %2510 = vxpose.xlu0.b32.cont [6/16] %v2136, 128
  %2511 = vxpose.xlu0.b32.cont [7/16] %v2139, 128
  %2512 = vxpose.xlu0.b32.cont [8/16] %v2142, 128
  %2513 = vxpose.xlu0.b32.cont [9/16] %v2145, 128
  %2514 = vxpose.xlu0.b32.cont [10/16] %v2148, 128
  %2515 = vxpose.xlu0.b32.cont [11/16] %v2151, 128
  %2516 = vxpose.xlu0.b32.cont [12/16] %v2154, 128
  %2517 = vxpose.xlu0.b32.cont [13/16] %v2157, 128
  %2518 = vxpose.xlu0.b32.cont [14/16] %v2160, 128
  %2519 = vxpose.xlu0.b32.cont [15/16] %v2163, 128
  %2520 = vxpose.xlu0.b32.end [16/16] %v2166, 128
  %v2521 = vpop.trf.xlu0
  %v2522 = vpop.trf.xlu0
  %v2523 = vpop.trf.xlu0
  %v2524 = vpop.trf.xlu0
  %v2525 = vpop.trf.xlu0
  %v2526 = vpop.trf.xlu0
  %v2527 = vpop.trf.xlu0
  %v2528 = vpop.trf.xlu0
  %v2529 = vpop.trf.xlu0
  %v2530 = vpop.trf.xlu0
  %v2531 = vpop.trf.xlu0
  %v2532 = vpop.trf.xlu0
  %v2533 = vpop.trf.xlu0
  %v2534 = vpop.trf.xlu0
  %v2535 = vpop.trf.xlu0
  %v2536 = vpop.trf.xlu0
  %vm2537 = vcmask 986112
  %2538 = vst.msk [vmem:[%s15] sm:$0xf] %vm2537, %v2521
  %2539 = vxpose.xlu0.b32.start [1/16] %v2458, 128
  %2540 = vxpose.xlu0.b32.cont [2/16] %v2461, 128
  %2541 = vxpose.xlu0.b32.cont [3/16] %v2464, 128
  %2542 = vxpose.xlu0.b32.cont [4/16] %v2467, 128
  %2543 = vxpose.xlu0.b32.cont [5/16] %v2470, 128
  %2544 = vxpose.xlu0.b32.cont [6/16] %v2473, 128
  %2545 = vxpose.xlu0.b32.cont [7/16] %v2476, 128
  %2546 = vxpose.xlu0.b32.cont [8/16] %v2479, 128
  %2547 = vxpose.xlu0.b32.cont [9/16] %v2482, 128
  %2548 = vxpose.xlu0.b32.cont [10/16] %v2485, 128
  %2549 = vxpose.xlu0.b32.cont [11/16] %v2488, 128
  %2550 = vxpose.xlu0.b32.cont [12/16] %v2491, 128
  %2551 = vxpose.xlu0.b32.cont [13/16] %v2494, 128
  %2552 = vxpose.xlu0.b32.cont [14/16] %v2497, 128
  %2553 = vxpose.xlu0.b32.cont [15/16] %v2500, 128
  %2554 = vxpose.xlu0.b32.end [16/16] %v2503, 128
  %v2555 = vpop.trf.xlu0
  %v2556 = vpop.trf.xlu0
  %v2557 = vpop.trf.xlu0
  %v2558 = vpop.trf.xlu0
  %v2559 = vpop.trf.xlu0
  %v2560 = vpop.trf.xlu0
  %v2561 = vpop.trf.xlu0
  %v2562 = vpop.trf.xlu0
  %v2563 = vpop.trf.xlu0
  %v2564 = vpop.trf.xlu0
  %v2565 = vpop.trf.xlu0
  %v2566 = vpop.trf.xlu0
  %v2567 = vpop.trf.xlu0
  %v2568 = vpop.trf.xlu0
  %v2569 = vpop.trf.xlu0
  %v2570 = vpop.trf.xlu0
  %s2571 = scalar_lea.vmem %s15, 4
  %2572 = vst.msk [vmem:[%s2571] sm:$0xf] %vm2537, %v2555
  // Predicated region
  $region58: #{dsn_gate_forward.1} parent=0 // pred_check
    _
  $region59: #{dsn_gate_forward.1} parent=0 // pred_check_branch
    %2574 = sbr.rel (0) target = $region61
  $region60: #{dsn_gate_forward.1} parent=0 // pred_region
    _
  $region61: #{dsn_gate_forward.1} parent=0 // pred_fallthru
    _
  // Predicated region
  $region62: #{dsn_gate_forward.1} parent=0 // pred_check
    _
  $region63: #{dsn_gate_forward.1} parent=0 // pred_check_branch
    %2576 = sbr.rel (0) target = $region65
  $region64: #{dsn_gate_forward.1} parent=0 // pred_region
    _
  $region65: #{dsn_gate_forward.1} parent=0 // pred_fallthru
    _
  // Predicated region
  $region66: #{dsn_gate_forward.1} parent=0 // pred_check
    _
  $region67: #{dsn_gate_forward.1} parent=0 // pred_check_branch
    %2578 = sbr.rel (0) target = $region69
  $region68: #{dsn_gate_forward.1} parent=0 // pred_region
    _
  $region69: #{dsn_gate_forward.1} parent=0 // pred_fallthru
    _
  // Predicated region
  $region70: #{dsn_gate_forward.1} parent=0 // pred_check
    _
  $region71: #{dsn_gate_forward.1} parent=0 // pred_check_branch
    %2580 = sbr.rel (0) target = $region73
  $region72: #{dsn_gate_forward.1} parent=0 // pred_region
    _
  $region73: #{dsn_gate_forward.1} parent=0 // pred_fallthru
    _

</llo_original>
